<compile_context>
chip_gen: v5e
topology: v5e:2x2
jax: 0.10.0
libtpu: 0.0.40
codegen_flags: <defaults>
</compile_context>

<pallas_src>
import functools
import numpy as np

import jax
import jax.numpy as jnp
from jax import lax
from jax.experimental import pallas as pl
from jax.experimental.pallas import tpu as pltpu

_DEF_TILE = 256          # rows per grid step; raise to 512-1024 on v6e (128 MiB VMEM)
_PPAR1 = pltpu.CompilerParams(dimension_semantics=("parallel",))


def _round_up(n, m):
    return ((n + m - 1) // m) * m


def _pad_rows(x, np_rows):
    n = x.shape[0]
    return x if n == np_rows else jnp.pad(x, ((0, np_rows - n), (0, 0)))


# ----------------------------------------------------------------------------
# Pallas kernels
# ----------------------------------------------------------------------------
def _mm_bias_act_kernel(x_ref, w_ref, b_ref, o_ref, *, act):
    """(tile, K) @ (K, C) + b with fused epilogue. bf16 operands, f32 accum."""
    acc = jnp.dot(x_ref[...], w_ref[...], preferred_element_type=jnp.float32)
    acc = acc + b_ref[...]
    if act == "relu":
        acc = jnp.maximum(acc, 0.0)
    elif act == "gate":                           # WaveNet gate: tanh(a)*sigmoid(b)
        h = acc.shape[-1] // 2
        acc = jnp.tanh(acc[:, :h]) * jax.nn.sigmoid(acc[:, h:])
    o_ref[...] = acc


def _layernorm_kernel(x_ref, g_ref, b_ref, o_ref, *, eps):
    x = x_ref[...]
    mu = jnp.mean(x, axis=-1, keepdims=True)
    xc = x - mu
    var = jnp.mean(xc * xc, axis=-1, keepdims=True)
    o_ref[...] = xc * lax.rsqrt(var + eps) * g_ref[...] + b_ref[...]


def _mha_kernel(q_ref, k_ref, v_ref, m_ref, o_ref, *, scale):
    # one (batch, head) block per grid step
    q = q_ref[0, 0].astype(jnp.bfloat16)          # (T, dk)
    k = k_ref[0, 0].astype(jnp.bfloat16)
    v = v_ref[0, 0].astype(jnp.bfloat16)
    s = lax.dot_general(q, k, (((1,), (1,)), ((), ())),
                        preferred_element_type=jnp.float32) * scale
    s = jnp.where(m_ref[0] > 0, s, -1e4)          # masked_fill(mask==0, -1e4)
    s = s - jnp.max(s, axis=-1, keepdims=True)
    p = jnp.exp(s)
    p = p / jnp.sum(p, axis=-1, keepdims=True)
    o_ref[0, 0] = jnp.dot(p.astype(jnp.bfloat16), v,
                          preferred_element_type=jnp.float32)


def _couple_kernel(stats_ref, x1_ref, m_ref, y_ref, logs_ref, *, reverse):
    half = x1_ref.shape[-1]
    mask = m_ref[...]
    m = stats_ref[:, :half] * mask
    logs = stats_ref[:, half:] * mask
    logs_ref[...] = logs
    if reverse:
        y_ref[...] = (x1_ref[...] - m) * jnp.exp(-logs) * mask
    else:
        y_ref[...] = m + x1_ref[...] * jnp.exp(logs) * mask


# ----------------------------------------------------------------------------
# Kernel wrappers
# ----------------------------------------------------------------------------
def matmul_bias_act(x, w, b, act="none", tile_rows=_DEF_TILE):
    """x: (N, K) f32, w: (K, C) f32, b: (C,). Row-tiled over a parallel grid."""
    N, K = x.shape
    C = w.shape[1]
    out_c = C // 2 if act == "gate" else C
    tile = min(tile_rows, _round_up(N, 16))       # 16-row multiple for bf16 blocks
    Np = _round_up(N, tile)
    xb = _pad_rows(x, Np).astype(jnp.bfloat16)
    wb = w.astype(jnp.bfloat16)
    out = pl.pallas_call(
        functools.partial(_mm_bias_act_kernel, act=act),
        out_shape=jax.ShapeDtypeStruct((Np, out_c), jnp.float32),
        grid=(Np // tile,),
        in_specs=[
            pl.BlockSpec((tile, K), lambda i: (i, 0)),     # streamed rows
            pl.BlockSpec((K, C), lambda i: (0, 0)),        # weights resident
            pl.BlockSpec((1, C), lambda i: (0, 0)),        # bias resident
        ],
        out_specs=pl.BlockSpec((tile, out_c), lambda i: (i, 0)),
        compiler_params=_PPAR1,
    )(xb, wb, b.reshape(1, C))
    return out[:N] if Np != N else out


def layernorm(x, gamma, beta, eps=1e-5, tile_rows=_DEF_TILE):
    N, C = x.shape
    tile = min(tile_rows, _round_up(N, 8))
    Np = _round_up(N, tile)
    out = pl.pallas_call(
        functools.partial(_layernorm_kernel, eps=eps),
        out_shape=jax.ShapeDtypeStruct((Np, C), jnp.float32),
        grid=(Np // tile,),
        in_specs=[pl.BlockSpec((tile, C), lambda i: (i, 0)),
                  pl.BlockSpec((1, C), lambda i: (0, 0)),
                  pl.BlockSpec((1, C), lambda i: (0, 0))],
        out_specs=pl.BlockSpec((tile, C), lambda i: (i, 0)),
        compiler_params=_PPAR1,
    )(_pad_rows(x, Np), gamma.reshape(1, C), beta.reshape(1, C))
    return out[:N] if Np != N else out


def multi_head_attention(q, k, v, attn_mask, n_heads):
    """q, k, v: (B, T, C); attn_mask: (B, T, T) -> (B, T, C)."""
    B, T, C = q.shape
    dk = C // n_heads

    def split(t):
        return t.reshape(B, T, n_heads, dk).transpose(0, 2, 1, 3)  # (B, H, T, dk)

    qh, kh, vh = split(q), split(k), split(v)
    out = pl.pallas_call(
        functools.partial(_mha_kernel, scale=float(1.0 / np.sqrt(dk))),
        out_shape=jax.ShapeDtypeStruct((B, n_heads, T, dk), jnp.float32),
        grid=(B, n_heads),
        in_specs=[
            pl.BlockSpec((1, 1, T, dk), lambda b, h: (b, h, 0, 0)),
            pl.BlockSpec((1, 1, T, dk), lambda b, h: (b, h, 0, 0)),
            pl.BlockSpec((1, 1, T, dk), lambda b, h: (b, h, 0, 0)),
            pl.BlockSpec((1, T, T), lambda b, h: (b, 0, 0)),
        ],
        out_specs=pl.BlockSpec((1, 1, T, dk), lambda b, h: (b, h, 0, 0)),
        compiler_params=pltpu.CompilerParams(
            dimension_semantics=("parallel", "parallel")),
    )(qh, kh, vh, attn_mask)
    # TODO(synk): for production shapes, fold heads into the lane dim and tile
    # over query rows (flash-style) for lane-dense blocks and longer T.
    return out.transpose(0, 2, 1, 3).reshape(B, T, C)


def affine_couple(stats, x1, mask_col, reverse=False, tile_rows=_DEF_TILE):
    """stats: (N, 2*half), x1: (N, half), mask_col: (N, 1)."""
    N, two_half = stats.shape
    half = two_half // 2
    tile = min(tile_rows, _round_up(N, 8))
    Np = _round_up(N, tile)
    y, logs = pl.pallas_call(
        functools.partial(_couple_kernel, reverse=reverse),
        out_shape=(jax.ShapeDtypeStruct((Np, half), jnp.float32),
                   jax.ShapeDtypeStruct((Np, half), jnp.float32)),
        grid=(Np // tile,),
        in_specs=[pl.BlockSpec((tile, two_half), lambda i: (i, 0)),
                  pl.BlockSpec((tile, half), lambda i: (i, 0)),
                  pl.BlockSpec((tile, 1), lambda i: (i, 0))],
        out_specs=(pl.BlockSpec((tile, half), lambda i: (i, 0)),
                   pl.BlockSpec((tile, half), lambda i: (i, 0))),
        compiler_params=_PPAR1,
    )(_pad_rows(stats, Np), _pad_rows(x1, Np), _pad_rows(mask_col, Np))
    if Np != N:
        y, logs = y[:N], logs[:N]
    return y, logs


# ----------------------------------------------------------------------------
# Conv1d = im2col (taps folded into contraction) + fused matmul kernel
# ----------------------------------------------------------------------------
def _im2col_1d(x_ntc, ks, dilation):
    B, T, C = x_ntc.shape
    pad = (ks * dilation - dilation) // 2
    xp = jnp.pad(x_ntc, ((0, 0), (pad, pad), (0, 0)))
    taps = [xp[:, k * dilation:k * dilation + T, :] for k in range(ks)]
    return jnp.concatenate(taps, axis=-1).reshape(B * T, ks * C)


def conv1d(x_ntc, w_kic, b, dilation=1, act="none"):
    """'same'-padded Conv1d. w_kic: (ks, Cin, Cout); taps folded into K."""
    B, T, _ = x_ntc.shape
    ks, Cin, Cout = w_kic.shape
    cols = x_ntc.reshape(B * T, Cin) if ks == 1 else _im2col_1d(x_ntc, ks, dilation)
    out = matmul_bias_act(cols, w_kic.reshape(ks * Cin, Cout), b, act=act)
    return out.reshape(B, T, -1)


# ----------------------------------------------------------------------------
# Sub-modules (pre_transformer Encoder, WN) and full forward
# ----------------------------------------------------------------------------
def encoder_forward(x, mask_col, attn_mask, layers, n_heads):
    """VITS attentions.Encoder (window_size=None), inference mode (no dropout)."""
    B, T, C = x.shape
    x = x * mask_col
    for lp in layers:
        xf = x.reshape(B * T, C)
        q = matmul_bias_act(xf, lp["wq"], lp["bq"]).reshape(B, T, C)
        k = matmul_bias_act(xf, lp["wk"], lp["bk"]).reshape(B, T, C)
        v = matmul_bias_act(xf, lp["wv"], lp["bv"]).reshape(B, T, C)
        attn = multi_head_attention(q, k, v, attn_mask, n_heads)
        y = matmul_bias_act(attn.reshape(B * T, C), lp["wo"], lp["bo"])
        x = layernorm(xf + y, lp["ln1_g"], lp["ln1_b"]).reshape(B, T, C)
        # FFN (kernel_size=3, "same" padding, relu fused into first conv)
        t = conv1d(x * mask_col, lp["ffn_w1"], lp["ffn_b1"], act="relu")
        t = conv1d(t * mask_col, lp["ffn_w2"], lp["ffn_b2"])
        y = (t * mask_col).reshape(B * T, C)
        x = layernorm(x.reshape(B * T, C) + y, lp["ln2_g"], lp["ln2_b"]).reshape(B, T, C)
    return x * mask_col


def wn_forward(h, mask_col, wn, kernel_size, dilation_rate, n_layers):
    """modules.WN with g=None (gin_channels=0); gate fused into the in_layer conv."""
    B, T, H = h.shape
    x = h
    output = jnp.zeros_like(h)
    for i in range(n_layers):
        dil = dilation_rate ** i
        acts = conv1d(x, wn["in_w"][i], wn["in_b"][i], dilation=dil, act="gate")
        rs = matmul_bias_act(acts.reshape(B * T, H),
                             wn["rs_w"][i], wn["rs_b"][i]).reshape(B, T, -1)
        if i < n_layers - 1:
            x = (x + rs[..., :H]) * mask_col
            output = output + rs[..., H:]
        else:
            output = output + rs
    return output * mask_col


def residual_coupling_transformers_layer_forward(x_nct, x_mask, params, cfg,
                                                 reverse=False):
    """x_nct: (B, C, T), x_mask: (B, 1, T).  Returns (x, logdet) or x if reverse."""
    channels, hidden = cfg["channels"], cfg["hidden_channels"]
    half = channels // 2
    B, _, T = x_nct.shape
    x_ntc = jnp.transpose(x_nct, (0, 2, 1))           # (B, T, C)
    mask_col = jnp.transpose(x_mask, (0, 2, 1))       # (B, T, 1)
    x0, x1 = x_ntc[..., :half], x_ntc[..., half:]
    mvec = mask_col[..., 0]
    attn_mask = mvec[:, :, None] * mvec[:, None, :]   # (B, T, T)

    # pre_transformer(x0 * mask) + residual
    x0_ = encoder_forward(x0 * mask_col, mask_col, attn_mask,
                          params["enc_pre"], n_heads=2)
    x0_ = x0_ + x0
    # pre 1x1 conv
    h = matmul_bias_act(x0_.reshape(B * T, half),
                        params["pre_w"], params["pre_b"]).reshape(B, T, hidden)
    h = h * mask_col
    # WN stack
    h = wn_forward(h, mask_col, params["wn"], cfg["kernel_size"],
                   cfg["dilation_rate"], cfg["n_layers"])
    # post 1x1 conv -> stats; affine coupling fused in a Pallas kernel
    # TODO(synk): mean_only=True branch and g/gin_channels conditioning not implemented.
    stats = matmul_bias_act(h.reshape(B * T, hidden),
                            params["post_w"], params["post_b"])
    y1, logs = affine_couple(stats, x1.reshape(B * T, half),
                             mask_col.reshape(B * T, 1), reverse=reverse)
    out = jnp.concatenate([x0, y1.reshape(B, T, half)], axis=-1)
    out_nct = jnp.transpose(out, (0, 2, 1))
    if reverse:
        return out_nct
    logdet = jnp.sum(logs.reshape(B, T * half), axis=-1)
    return out_nct, logdet


# ----------------------------------------------------------------------------
# Parameter init (weight_norm at init == raw weights; note: PyTorch zero-inits
# `post`, we use small random values so the coupling math is actually exercised)
# ----------------------------------------------------------------------------
def init_params(key, channels, hidden_channels, kernel_size, dilation_rate, n_layers):
    half = channels // 2
    keys = iter(jax.random.split(key, 256))

    def dense(cin, cout, scale=None):
        s = (1.0 / np.sqrt(cin)) if scale is None else scale
        w = jax.random.normal(next(keys), (cin, cout), jnp.float32) * s
        b = jax.random.normal(next(keys), (cout,), jnp.float32) * 0.01
        return w, b

    def convk(ks, cin, cout):
        s = 1.0 / np.sqrt(cin * ks)
        w = jax.random.normal(next(keys), (ks, cin, cout), jnp.float32) * s
        b = jax.random.normal(next(keys), (cout,), jnp.float32) * 0.01
        return w, b

    enc_layers = []
    for _ in range(2):                                 # pre_transformer: n_layers=2
        lp = {}
        for nm in ("q", "k", "v", "o"):
            lp["w" + nm], lp["b" + nm] = dense(half, half)
        lp["ln1_g"] = jnp.ones((half,), jnp.float32)
        lp["ln1_b"] = jnp.zeros((half,), jnp.float32)
        lp["ffn_w1"], lp["ffn_b1"] = convk(3, half, half)
        lp["ffn_w2"], lp["ffn_b2"] = convk(3, half, half)
        lp["ln2_g"] = jnp.ones((half,), jnp.float32)
        lp["ln2_b"] = jnp.zeros((half,), jnp.float32)
        enc_layers.append(lp)

    pre_w, pre_b = dense(half, hidden_channels)
    in_w, in_b, rs_w, rs_b = [], [], [], []
    for i in range(n_layers):
        w, b = convk(kernel_size, hidden_channels, 2 * hidden_channels)
        in_w.append(w); in_b.append(b)
        cout = 2 * hidden_channels if i < n_layers - 1 else hidden_channels
        w, b = dense(hidden_channels, cout)
        rs_w.append(w); rs_b.append(b)
    post_w, post_b = dense(hidden_channels, 2 * half,
                           scale=0.1 / np.sqrt(hidden_channels))
    return {"enc_pre": enc_layers,
            "pre_w": pre_w, "pre_b": pre_b,
            "wn": {"in_w": in_w, "in_b": in_b, "rs_w": rs_w, "rs_b": rs_b},
            "post_w": post_w, "post_b": post_b}


# ----------------------------------------------------------------------------
# Pure-JAX reference (same bf16-operand / f32-accumulate matmuls)
# ----------------------------------------------------------------------------
def _ref_matmul(x, w, b):
    return jnp.dot(x.astype(jnp.bfloat16), w.astype(jnp.bfloat16),
                   preferred_element_type=jnp.float32) + b


def _ref_conv1d(x_ntc, w_kic, b, dilation=1):
    B, T, _ = x_ntc.shape
    ks = w_kic.shape[0]
    pad = (ks * dilation - dilation) // 2
    xp = jnp.pad(x_ntc, ((0, 0), (pad, pad), (0, 0)))
    out = jnp.zeros((B, T, w_kic.shape[2]), jnp.float32)
    for kk in range(ks):
        seg = xp[:, kk * dilation:kk * dilation + T, :]
        out = out + jnp.einsum("btc,cd->btd", seg.astype(jnp.bfloat16),
                               w_kic[kk].astype(jnp.bfloat16),
                               preferred_element_type=jnp.float32)
    return out + b


def _ref_layernorm(x, g, b, eps=1e-5):
    mu = jnp.mean(x, -1, keepdims=True)
    xc = x - mu
    var = jnp.mean(xc * xc, -1, keepdims=True)
    return xc * lax.rsqrt(var + eps) * g + b


def _ref_encoder(x, mask_col, attn_mask, layers, n_heads):
    B, T, C = x.shape
    dk = C // n_heads
    x = x * mask_col
    for lp in layers:
        xf = x.reshape(B * T, C)
        q = _ref_matmul(xf, lp["wq"], lp["bq"]).reshape(B, T, n_heads, dk).transpose(0, 2, 1, 3)
        k = _ref_matmul(xf, lp["wk"], lp["bk"]).reshape(B, T, n_heads, dk).transpose(0, 2, 1, 3)
        v = _ref_matmul(xf, lp["wv"], lp["bv"]).reshape(B, T, n_heads, dk).transpose(0, 2, 1, 3)
        s = jnp.einsum("bhtd,bhsd->bhts", q.astype(jnp.bfloat16), k.astype(jnp.bfloat16),
                       preferred_element_type=jnp.float32) * (1.0 / np.sqrt(dk))
        s = jnp.where(attn_mask[:, None, :, :] > 0, s, -1e4)
        p = jax.nn.softmax(s, axis=-1)
        o = jnp.einsum("bhts,bhsd->bhtd", p.astype(jnp.bfloat16), v.astype(jnp.bfloat16),
                       preferred_element_type=jnp.float32)
        o = o.transpose(0, 2, 1, 3).reshape(B * T, C)
        y = _ref_matmul(o, lp["wo"], lp["bo"])
        x = _ref_layernorm(xf + y, lp["ln1_g"], lp["ln1_b"]).reshape(B, T, C)
        t1 = jnp.maximum(_ref_conv1d(x * mask_col, lp["ffn_w1"], lp["ffn_b1"]), 0.0)
        t2 = _ref_conv1d(t1 * mask_col, lp["ffn_w2"], lp["ffn_b2"])
        y = (t2 * mask_col).reshape(B * T, C)
        x = _ref_layernorm(x.reshape(B * T, C) + y, lp["ln2_g"], lp["ln2_b"]).reshape(B, T, C)
    return x * mask_col


def _ref_wn(h, mask_col, wn, kernel_size, dilation_rate, n_layers):
    B, T, H = h.shape
    x = h
    out = jnp.zeros_like(h)
    for i in range(n_layers):
        dil = dilation_rate ** i
        xin = _ref_conv1d(x, wn["in_w"][i], wn["in_b"][i], dilation=dil)
        acts = jnp.tanh(xin[..., :H]) * jax.nn.sigmoid(xin[..., H:])
        rs = _ref_matmul(acts.reshape(B * T, H), wn["rs_w"][i], wn["rs_b"][i]).reshape(B, T, -1)
        if i < n_layers - 1:
            x = (x + rs[..., :H]) * mask_col
            out = out + rs[..., H:]
        else:
            out = out + rs
    return out * mask_col


def reference_forward(x_nct, x_mask, params, cfg, reverse=False):
    channels, hidden = cfg["channels"], cfg["hidden_channels"]
    half = channels // 2
    B, _, T = x_nct.shape
    x_ntc = jnp.transpose(x_nct, (0, 2, 1))
    mask_col = jnp.transpose(x_mask, (0, 2, 1))
    x0, x1 = x_ntc[..., :half], x_ntc[..., half:]
    mvec = mask_col[..., 0]
    attn_mask = mvec[:, :, None] * mvec[:, None, :]
    x0_ = _ref_encoder(x0 * mask_col, mask_col, attn_mask, params["enc_pre"], 2) + x0
    h = (_ref_matmul(x0_.reshape(B * T, half), params["pre_w"], params["pre_b"])
         .reshape(B, T, hidden)) * mask_col
    h = _ref_wn(h, mask_col, params["wn"], cfg["kernel_size"],
                cfg["dilation_rate"], cfg["n_layers"])
    stats = (_ref_matmul(h.reshape(B * T, hidden), params["post_w"], params["post_b"])
             .reshape(B, T, 2 * half)) * mask_col
    m, logs = stats[..., :half], stats[..., half:]
    if not reverse:
        x1n = m + x1 * jnp.exp(logs) * mask_col
        out = jnp.transpose(jnp.concatenate([x0, x1n], -1), (0, 2, 1))
        return out, jnp.sum(logs, axis=(1, 2))
    x1n = (x1 - m) * jnp.exp(-logs) * mask_col
    return jnp.transpose(jnp.concatenate([x0, x1n], -1), (0, 2, 1))


# ----------------------------------------------------------------------------
if __name__ == "__main__":
    key = jax.random.PRNGKey(0)
    kx, kp = jax.random.split(key)

    cfg = dict(channels=16, hidden_channels=32, kernel_size=5,
               dilation_rate=2, n_layers=3)
    B, T = 2, 16
    x = jax.random.normal(kx, (B, cfg["channels"], T), jnp.float32)
    lengths = jnp.array([T, T - 5])
    x_mask = (jnp.arange(T)[None, :] < lengths[:, None]).astype(jnp.float32)[:, None, :]
    params = init_params(kp, **cfg)

    fwd = jax.jit(lambda a, m, p: residual_coupling_transformers_layer_forward(a, m, p, cfg))
    rev = jax.jit(lambda a, m, p: residual_coupling_transformers_layer_forward(
        a, m, p, cfg, reverse=True))
    ref_fwd = jax.jit(lambda a, m, p: reference_forward(a, m, p, cfg))
    ref_rev = jax.jit(lambda a, m, p: reference_forward(a, m, p, cfg, reverse=True))

    out, logdet = fwd(x, x_mask, params)
    out = jax.block_until_ready(out)

    ref_out, ref_logdet = ref_fwd(x, x_mask, params)
    np.testing.assert_allclose(np.asarray(out), np.asarray(ref_out), rtol=5e-3, atol=5e-3)
    np.testing.assert_allclose(np.asarray(logdet), np.asarray(ref_logdet), rtol=5e-3, atol=1e-2)

    x_rec = jax.block_until_ready(rev(out, x_mask, params))
    ref_rec = ref_rev(out, x_mask, params)
    np.testing.assert_allclose(np.asarray(x_rec), np.asarray(ref_rec), rtol=5e-3, atol=5e-3)

    print("KERNEL_OK")
</pallas_src>

<mosaic_0001>
module attributes {stable_mosaic.version = 11 : i64} {
  func.func @_mm_bias_act_kernel(%arg0: i32, %arg1: memref<32x8xbf16, #tpu.memory_space<vmem>>, %arg2: memref<8x8xbf16, #tpu.memory_space<vmem>>, %arg3: memref<1x8xf32, #tpu.memory_space<vmem>>, %arg4: memref<32x8xf32, #tpu.memory_space<vmem>>) attributes {dimension_semantics = [#tpu.dimension_semantics<parallel>], iteration_bounds = array<i64: 1>, scalar_prefetch = 0 : i64, scratch_operands = 0 : i64, tpu.core_type = #tpu.core_type<tc>, window_params = [{transform_indices = @transform_0, window_bounds = array<i64: 32, 8>}, {pipeline_mode = #tpu.pipeline_mode<synchronous>, transform_indices = @transform_1, window_bounds = array<i64: 8, 8>}, {pipeline_mode = #tpu.pipeline_mode<synchronous>, transform_indices = @transform_2, window_bounds = array<i64: 1, 8>}, {transform_indices = @transform_3, window_bounds = array<i64: 32, 8>}]} {
    %c0 = arith.constant 0 : index
    %c0_0 = arith.constant 0 : index
    %0 = vector.load %arg1[%c0, %c0_0] : memref<32x8xbf16, #tpu.memory_space<vmem>>, vector<32x8xbf16>
    %c0_1 = arith.constant 0 : index
    %c0_2 = arith.constant 0 : index
    %1 = vector.load %arg2[%c0_1, %c0_2] : memref<8x8xbf16, #tpu.memory_space<vmem>>, vector<8x8xbf16>
    %cst = arith.constant dense<0.000000e+00> : vector<32x8xf32>
    %2 = tpu.matmul %0, %1, %cst {dimension_numbers = #tpu.dot_dimension_numbers<[1], [0], [0], [1], [0, 0, 1, 1], [], []>} : vector<32x8xbf16>, vector<8x8xbf16>, vector<32x8xf32> -> vector<32x8xf32>
    %c0_3 = arith.constant 0 : index
    %c0_4 = arith.constant 0 : index
    %3 = vector.load %arg3[%c0_3, %c0_4] : memref<1x8xf32, #tpu.memory_space<vmem>>, vector<1x8xf32>
    %4 = vector.broadcast %3 : vector<1x8xf32> to vector<32x8xf32>
    %5 = arith.addf %2, %4 : vector<32x8xf32>
    %c0_5 = arith.constant 0 : index
    %c0_6 = arith.constant 0 : index
    %6 = vector.load %arg4[%c0_5, %c0_6] : memref<32x8xf32, #tpu.memory_space<vmem>>, vector<32x8xf32>
    tpu.vector_store %arg4[%c0_5, %c0_6], %5 {strides = array<i32>} : memref<32x8xf32, #tpu.memory_space<vmem>>, vector<32x8xf32>,
    return
  }
  func.func @transform_0(%arg0: i32) -> (i32, i32) {
    %c0_i32 = arith.constant 0 : i32
    %c0_i32_0 = arith.constant 0 : i32
    return %arg0, %c0_i32 : i32, i32
  }
  func.func @transform_1(%arg0: i32) -> (i32, i32) {
    %c0_i32 = arith.constant 0 : i32
    %c0_i32_0 = arith.constant 0 : i32
    %c0_i32_1 = arith.constant 0 : i32
    return %c0_i32, %c0_i32_0 : i32, i32
  }
  func.func @transform_2(%arg0: i32) -> (i32, i32) {
    %c0_i32 = arith.constant 0 : i32
    %c0_i32_0 = arith.constant 0 : i32
    %c0_i32_1 = arith.constant 0 : i32
    return %c0_i32, %c0_i32_0 : i32, i32
  }
  func.func @transform_3(%arg0: i32) -> (i32, i32) {
    %c0_i32 = arith.constant 0 : i32
    %c0_i32_0 = arith.constant 0 : i32
    return %arg0, %c0_i32 : i32, i32
  }
}

module attributes {stable_mosaic.version = 11 : i64} {
  func.func @_mha_kernel(%arg0: i32, %arg1: i32, %arg2: memref<1x1x16x4xf32, #tpu.memory_space<vmem>>, %arg3: memref<1x1x16x4xf32, #tpu.memory_space<vmem>>, %arg4: memref<1x1x16x4xf32, #tpu.memory_space<vmem>>, %arg5: memref<1x16x16xf32, #tpu.memory_space<vmem>>, %arg6: memref<1x1x16x4xf32, #tpu.memory_space<vmem>>) attributes {dimension_semantics = [#tpu.dimension_semantics<parallel>, #tpu.dimension_semantics<parallel>], iteration_bounds = array<i64: 2, 2>, scalar_prefetch = 0 : i64, scratch_operands = 0 : i64, tpu.core_type = #tpu.core_type<tc>, window_params = [{transform_indices = @transform_0, window_bounds = array<i64: 1, 1, 16, 4>}, {transform_indices = @transform_1, window_bounds = array<i64: 1, 1, 16, 4>}, {transform_indices = @transform_2, window_bounds = array<i64: 1, 1, 16, 4>}, {transform_indices = @transform_3, window_bounds = array<i64: 1, 16, 16>}, {transform_indices = @transform_4, window_bounds = array<i64: 1, 1, 16, 4>}]} {
    %c0 = arith.constant 0 : index
    %c0_0 = arith.constant 0 : index
    %c0_1 = arith.constant 0 : index
    %c0_2 = arith.constant 0 : index
    %0 = vector.load %arg2[%c0, %c0_0, %c0_1, %c0_2] : memref<1x1x16x4xf32, #tpu.memory_space<vmem>>, vector<1x1x16x4xf32>
    %1 = vector.shape_cast %0 : vector<1x1x16x4xf32> to vector<16x4xf32>
    %2 = arith.truncf %1 : vector<16x4xf32> to vector<16x4xbf16>
    %c0_3 = arith.constant 0 : index
    %c0_4 = arith.constant 0 : index
    %c0_5 = arith.constant 0 : index
    %c0_6 = arith.constant 0 : index
    %3 = vector.load %arg3[%c0_3, %c0_4, %c0_5, %c0_6] : memref<1x1x16x4xf32, #tpu.memory_space<vmem>>, vector<1x1x16x4xf32>
    %4 = vector.shape_cast %3 : vector<1x1x16x4xf32> to vector<16x4xf32>
    %5 = arith.truncf %4 : vector<16x4xf32> to vector<16x4xbf16>
    %c0_7 = arith.constant 0 : index
    %c0_8 = arith.constant 0 : index
    %c0_9 = arith.constant 0 : index
    %c0_10 = arith.constant 0 : index
    %6 = vector.load %arg4[%c0_7, %c0_8, %c0_9, %c0_10] : memref<1x1x16x4xf32, #tpu.memory_space<vmem>>, vector<1x1x16x4xf32>
    %7 = vector.shape_cast %6 : vector<1x1x16x4xf32> to vector<16x4xf32>
    %8 = arith.truncf %7 : vector<16x4xf32> to vector<16x4xbf16>
    %cst = arith.constant dense<0.000000e+00> : vector<16x16xf32>
    %9 = tpu.matmul %2, %5, %cst {dimension_numbers = #tpu.dot_dimension_numbers<[1], [1], [0], [0], [0, 0, 1, 0], [], []>} : vector<16x4xbf16>, vector<16x4xbf16>, vector<16x16xf32> -> vector<16x16xf32>
    %cst_11 = arith.constant 5.000000e-01 : f32
    %10 = vector.broadcast %cst_11 : f32 to vector<16x16xf32>
    %11 = arith.mulf %9, %10 : vector<16x16xf32>
    %c0_12 = arith.constant 0 : index
    %c0_13 = arith.constant 0 : index
    %c0_14 = arith.constant 0 : index
    %12 = vector.load %arg5[%c0_12, %c0_13, %c0_14] : memref<1x16x16xf32, #tpu.memory_space<vmem>>, vector<1x16x16xf32>
    %13 = vector.shape_cast %12 : vector<1x16x16xf32> to vector<16x16xf32>
    %cst_15 = arith.constant 0.000000e+00 : f32
    %14 = vector.broadcast %cst_15 : f32 to vector<16x16xf32>
    %15 = arith.cmpf ogt, %13, %14 : vector<16x16xf32>
    %cst_16 = arith.constant -1.000000e+04 : f32
    %16 = vector.broadcast %cst_16 : f32 to vector<16x16xf32>
    %17 = arith.select %15, %11, %16 : vector<16x16xi1>, vector<16x16xf32>
    %cst_17 = arith.constant dense<0xFF800000> : vector<16xf32>
    %18 = vector.multi_reduction <maximumf>, %17, %cst_17 [1] : vector<16x16xf32> to vector<16xf32>
    %19 = vector.shape_cast %18 : vector<16xf32> to vector<16x1xf32>
    %20 = vector.broadcast %19 : vector<16x1xf32> to vector<16x16xf32>
    %21 = arith.subf %17, %20 : vector<16x16xf32>
    %22 = math.exp %21 : vector<16x16xf32>
    %cst_18 = arith.constant dense<0.000000e+00> : vector<16xf32>
    %23 = vector.multi_reduction <add>, %22, %cst_18 [1] : vector<16x16xf32> to vector<16xf32>
    %24 = vector.shape_cast %23 : vector<16xf32> to vector<16x1xf32>
    %25 = vector.broadcast %24 : vector<16x1xf32> to vector<16x16xf32>
    %26 = arith.divf %22, %25 : vector<16x16xf32>
    %27 = arith.truncf %26 : vector<16x16xf32> to vector<16x16xbf16>
    %cst_19 = arith.constant dense<0.000000e+00> : vector<16x4xf32>
    %28 = tpu.matmul %27, %8, %cst_19 {dimension_numbers = #tpu.dot_dimension_numbers<[1], [0], [0], [1], [0, 0, 1, 1], [], []>} : vector<16x16xbf16>, vector<16x4xbf16>, vector<16x4xf32> -> vector<16x4xf32>
    %c0_20 = arith.constant 0 : index
    %c0_21 = arith.constant 0 : index
    %c0_22 = arith.constant 0 : index
    %c0_23 = arith.constant 0 : index
    %29 = vector.load %arg6[%c0_20, %c0_21, %c0_22, %c0_23] : memref<1x1x16x4xf32, #tpu.memory_space<vmem>>, vector<1x1x16x4xf32>
    %30 = vector.shape_cast %29 : vector<1x1x16x4xf32> to vector<16x4xf32>
    %31 = vector.shape_cast %28 : vector<16x4xf32> to vector<1x1x16x4xf32>
    tpu.vector_store %arg6[%c0_20, %c0_21, %c0_22, %c0_23], %31 {strides = array<i32>} : memref<1x1x16x4xf32, #tpu.memory_space<vmem>>, vector<1x1x16x4xf32>,
    return
  }
  func.func @transform_0(%arg0: i32, %arg1: i32) -> (i32, i32, i32, i32) {
    %c0_i32 = arith.constant 0 : i32
    %c0_i32_0 = arith.constant 0 : i32
    %c0_i32_1 = arith.constant 0 : i32
    return %arg0, %arg1, %c0_i32, %c0_i32_0 : i32, i32, i32, i32
  }
  func.func @transform_1(%arg0: i32, %arg1: i32) -> (i32, i32, i32, i32) {
    %c0_i32 = arith.constant 0 : i32
    %c0_i32_0 = arith.constant 0 : i32
    %c0_i32_1 = arith.constant 0 : i32
    return %arg0, %arg1, %c0_i32, %c0_i32_0 : i32, i32, i32, i32
  }
  func.func @transform_2(%arg0: i32, %arg1: i32) -> (i32, i32, i32, i32) {
    %c0_i32 = arith.constant 0 : i32
    %c0_i32_0 = arith.constant 0 : i32
    %c0_i32_1 = arith.constant 0 : i32
    return %arg0, %arg1, %c0_i32, %c0_i32_0 : i32, i32, i32, i32
  }
  func.func @transform_3(%arg0: i32, %arg1: i32) -> (i32, i32, i32) {
    %c0_i32 = arith.constant 0 : i32
    %c0_i32_0 = arith.constant 0 : i32
    %c0_i32_1 = arith.constant 0 : i32
    return %arg0, %c0_i32, %c0_i32_0 : i32, i32, i32
  }
  func.func @transform_4(%arg0: i32, %arg1: i32) -> (i32, i32, i32, i32) {
    %c0_i32 = arith.constant 0 : i32
    %c0_i32_0 = arith.constant 0 : i32
    %c0_i32_1 = arith.constant 0 : i32
    return %arg0, %arg1, %c0_i32, %c0_i32_0 : i32, i32, i32, i32
  }
}

module attributes {stable_mosaic.version = 11 : i64} {
  func.func @_layernorm_kernel(%arg0: i32, %arg1: memref<32x8xf32, #tpu.memory_space<vmem>>, %arg2: memref<1x8xf32, #tpu.memory_space<vmem>>, %arg3: memref<1x8xf32, #tpu.memory_space<vmem>>, %arg4: memref<32x8xf32, #tpu.memory_space<vmem>>) attributes {dimension_semantics = [#tpu.dimension_semantics<parallel>], iteration_bounds = array<i64: 1>, scalar_prefetch = 0 : i64, scratch_operands = 0 : i64, tpu.core_type = #tpu.core_type<tc>, window_params = [{transform_indices = @transform_0, window_bounds = array<i64: 32, 8>}, {pipeline_mode = #tpu.pipeline_mode<synchronous>, transform_indices = @transform_1, window_bounds = array<i64: 1, 8>}, {pipeline_mode = #tpu.pipeline_mode<synchronous>, transform_indices = @transform_2, window_bounds = array<i64: 1, 8>}, {transform_indices = @transform_3, window_bounds = array<i64: 32, 8>}]} {
    %c0 = arith.constant 0 : index
    %c0_0 = arith.constant 0 : index
    %0 = vector.load %arg1[%c0, %c0_0] : memref<32x8xf32, #tpu.memory_space<vmem>>, vector<32x8xf32>
    %cst = arith.constant dense<0.000000e+00> : vector<32xf32>
    %1 = vector.multi_reduction <add>, %0, %cst [1] : vector<32x8xf32> to vector<32xf32>
    %2 = vector.shape_cast %1 : vector<32xf32> to vector<32x1xf32>
    %cst_1 = arith.constant 8.000000e+00 : f32
    %3 = vector.broadcast %cst_1 : f32 to vector<32x1xf32>
    %4 = arith.divf %2, %3 : vector<32x1xf32>
    %5 = vector.broadcast %4 : vector<32x1xf32> to vector<32x8xf32>
    %6 = arith.subf %0, %5 : vector<32x8xf32>
    %7 = arith.mulf %6, %6 : vector<32x8xf32>
    %cst_2 = arith.constant dense<0.000000e+00> : vector<32xf32>
    %8 = vector.multi_reduction <add>, %7, %cst_2 [1] : vector<32x8xf32> to vector<32xf32>
    %9 = vector.shape_cast %8 : vector<32xf32> to vector<32x1xf32>
    %cst_3 = arith.constant 8.000000e+00 : f32
    %10 = vector.broadcast %cst_3 : f32 to vector<32x1xf32>
    %11 = arith.divf %9, %10 : vector<32x1xf32>
    %cst_4 = arith.constant 9.99999974E-6 : f32
    %12 = vector.broadcast %cst_4 : f32 to vector<32x1xf32>
    %13 = arith.addf %11, %12 : vector<32x1xf32>
    %14 = math.rsqrt %13 : vector<32x1xf32>
    %15 = vector.broadcast %14 : vector<32x1xf32> to vector<32x8xf32>
    %16 = arith.mulf %6, %15 : vector<32x8xf32>
    %c0_5 = arith.constant 0 : index
    %c0_6 = arith.constant 0 : index
    %17 = vector.load %arg2[%c0_5, %c0_6] : memref<1x8xf32, #tpu.memory_space<vmem>>, vector<1x8xf32>
    %18 = vector.broadcast %17 : vector<1x8xf32> to vector<32x8xf32>
    %19 = arith.mulf %16, %18 : vector<32x8xf32>
    %c0_7 = arith.constant 0 : index
    %c0_8 = arith.constant 0 : index
    %20 = vector.load %arg3[%c0_7, %c0_8] : memref<1x8xf32, #tpu.memory_space<vmem>>, vector<1x8xf32>
    %21 = vector.broadcast %20 : vector<1x8xf32> to vector<32x8xf32>
    %22 = arith.addf %19, %21 : vector<32x8xf32>
    %c0_9 = arith.constant 0 : index
    %c0_10 = arith.constant 0 : index
    %23 = vector.load %arg4[%c0_9, %c0_10] : memref<32x8xf32, #tpu.memory_space<vmem>>, vector<32x8xf32>
    tpu.vector_store %arg4[%c0_9, %c0_10], %22 {strides = array<i32>} : memref<32x8xf32, #tpu.memory_space<vmem>>, vector<32x8xf32>,
    return
  }
  func.func @transform_0(%arg0: i32) -> (i32, i32) {
    %c0_i32 = arith.constant 0 : i32
    %c0_i32_0 = arith.constant 0 : i32
    return %arg0, %c0_i32 : i32, i32
  }
  func.func @transform_1(%arg0: i32) -> (i32, i32) {
    %c0_i32 = arith.constant 0 : i32
    %c0_i32_0 = arith.constant 0 : i32
    %c0_i32_1 = arith.constant 0 : i32
    return %c0_i32, %c0_i32_0 : i32, i32
  }
  func.func @transform_2(%arg0: i32) -> (i32, i32) {
    %c0_i32 = arith.constant 0 : i32
    %c0_i32_0 = arith.constant 0 : i32
    %c0_i32_1 = arith.constant 0 : i32
    return %c0_i32, %c0_i32_0 : i32, i32
  }
  func.func @transform_3(%arg0: i32) -> (i32, i32) {
    %c0_i32 = arith.constant 0 : i32
    %c0_i32_0 = arith.constant 0 : i32
    return %arg0, %c0_i32 : i32, i32
  }
}

module attributes {stable_mosaic.version = 11 : i64} {
  func.func @_mm_bias_act_kernel(%arg0: i32, %arg1: memref<32x24xbf16, #tpu.memory_space<vmem>>, %arg2: memref<24x8xbf16, #tpu.memory_space<vmem>>, %arg3: memref<1x8xf32, #tpu.memory_space<vmem>>, %arg4: memref<32x8xf32, #tpu.memory_space<vmem>>) attributes {dimension_semantics = [#tpu.dimension_semantics<parallel>], iteration_bounds = array<i64: 1>, scalar_prefetch = 0 : i64, scratch_operands = 0 : i64, tpu.core_type = #tpu.core_type<tc>, window_params = [{transform_indices = @transform_0, window_bounds = array<i64: 32, 24>}, {pipeline_mode = #tpu.pipeline_mode<synchronous>, transform_indices = @transform_1, window_bounds = array<i64: 24, 8>}, {pipeline_mode = #tpu.pipeline_mode<synchronous>, transform_indices = @transform_2, window_bounds = array<i64: 1, 8>}, {transform_indices = @transform_3, window_bounds = array<i64: 32, 8>}]} {
    %c0 = arith.constant 0 : index
    %c0_0 = arith.constant 0 : index
    %0 = vector.load %arg1[%c0, %c0_0] : memref<32x24xbf16, #tpu.memory_space<vmem>>, vector<32x24xbf16>
    %c0_1 = arith.constant 0 : index
    %c0_2 = arith.constant 0 : index
    %1 = vector.load %arg2[%c0_1, %c0_2] : memref<24x8xbf16, #tpu.memory_space<vmem>>, vector<24x8xbf16>
    %cst = arith.constant dense<0.000000e+00> : vector<32x8xf32>
    %2 = tpu.matmul %0, %1, %cst {dimension_numbers = #tpu.dot_dimension_numbers<[1], [0], [0], [1], [0, 0, 1, 1], [], []>} : vector<32x24xbf16>, vector<24x8xbf16>, vector<32x8xf32> -> vector<32x8xf32>
    %c0_3 = arith.constant 0 : index
    %c0_4 = arith.constant 0 : index
    %3 = vector.load %arg3[%c0_3, %c0_4] : memref<1x8xf32, #tpu.memory_space<vmem>>, vector<1x8xf32>
    %4 = vector.broadcast %3 : vector<1x8xf32> to vector<32x8xf32>
    %5 = arith.addf %2, %4 : vector<32x8xf32>
    %cst_5 = arith.constant 0.000000e+00 : f32
    %6 = vector.broadcast %cst_5 : f32 to vector<32x8xf32>
    %7 = arith.maximumf %5, %6 : vector<32x8xf32>
    %c0_6 = arith.constant 0 : index
    %c0_7 = arith.constant 0 : index
    %8 = vector.load %arg4[%c0_6, %c0_7] : memref<32x8xf32, #tpu.memory_space<vmem>>, vector<32x8xf32>
    tpu.vector_store %arg4[%c0_6, %c0_7], %7 {strides = array<i32>} : memref<32x8xf32, #tpu.memory_space<vmem>>, vector<32x8xf32>,
    return
  }
  func.func @transform_0(%arg0: i32) -> (i32, i32) {
    %c0_i32 = arith.constant 0 : i32
    %c0_i32_0 = arith.constant 0 : i32
    return %arg0, %c0_i32 : i32, i32
  }
  func.func @transform_1(%arg0: i32) -> (i32, i32) {
    %c0_i32 = arith.constant 0 : i32
    %c0_i32_0 = arith.constant 0 : i32
    %c0_i32_1 = arith.constant 0 : i32
    return %c0_i32, %c0_i32_0 : i32, i32
  }
  func.func @transform_2(%arg0: i32) -> (i32, i32) {
    %c0_i32 = arith.constant 0 : i32
    %c0_i32_0 = arith.constant 0 : i32
    %c0_i32_1 = arith.constant 0 : i32
    return %c0_i32, %c0_i32_0 : i32, i32
  }
  func.func @transform_3(%arg0: i32) -> (i32, i32) {
    %c0_i32 = arith.constant 0 : i32
    %c0_i32_0 = arith.constant 0 : i32
    return %arg0, %c0_i32 : i32, i32
  }
}

module attributes {stable_mosaic.version = 11 : i64} {
  func.func @_mm_bias_act_kernel(%arg0: i32, %arg1: memref<32x24xbf16, #tpu.memory_space<vmem>>, %arg2: memref<24x8xbf16, #tpu.memory_space<vmem>>, %arg3: memref<1x8xf32, #tpu.memory_space<vmem>>, %arg4: memref<32x8xf32, #tpu.memory_space<vmem>>) attributes {dimension_semantics = [#tpu.dimension_semantics<parallel>], iteration_bounds = array<i64: 1>, scalar_prefetch = 0 : i64, scratch_operands = 0 : i64, tpu.core_type = #tpu.core_type<tc>, window_params = [{transform_indices = @transform_0, window_bounds = array<i64: 32, 24>}, {pipeline_mode = #tpu.pipeline_mode<synchronous>, transform_indices = @transform_1, window_bounds = array<i64: 24, 8>}, {pipeline_mode = #tpu.pipeline_mode<synchronous>, transform_indices = @transform_2, window_bounds = array<i64: 1, 8>}, {transform_indices = @transform_3, window_bounds = array<i64: 32, 8>}]} {
    %c0 = arith.constant 0 : index
    %c0_0 = arith.constant 0 : index
    %0 = vector.load %arg1[%c0, %c0_0] : memref<32x24xbf16, #tpu.memory_space<vmem>>, vector<32x24xbf16>
    %c0_1 = arith.constant 0 : index
    %c0_2 = arith.constant 0 : index
    %1 = vector.load %arg2[%c0_1, %c0_2] : memref<24x8xbf16, #tpu.memory_space<vmem>>, vector<24x8xbf16>
    %cst = arith.constant dense<0.000000e+00> : vector<32x8xf32>
    %2 = tpu.matmul %0, %1, %cst {dimension_numbers = #tpu.dot_dimension_numbers<[1], [0], [0], [1], [0, 0, 1, 1], [], []>} : vector<32x24xbf16>, vector<24x8xbf16>, vector<32x8xf32> -> vector<32x8xf32>
    %c0_3 = arith.constant 0 : index
    %c0_4 = arith.constant 0 : index
    %3 = vector.load %arg3[%c0_3, %c0_4] : memref<1x8xf32, #tpu.memory_space<vmem>>, vector<1x8xf32>
    %4 = vector.broadcast %3 : vector<1x8xf32> to vector<32x8xf32>
    %5 = arith.addf %2, %4 : vector<32x8xf32>
    %c0_5 = arith.constant 0 : index
    %c0_6 = arith.constant 0 : index
    %6 = vector.load %arg4[%c0_5, %c0_6] : memref<32x8xf32, #tpu.memory_space<vmem>>, vector<32x8xf32>
    tpu.vector_store %arg4[%c0_5, %c0_6], %5 {strides = array<i32>} : memref<32x8xf32, #tpu.memory_space<vmem>>, vector<32x8xf32>,
    return
  }
  func.func @transform_0(%arg0: i32) -> (i32, i32) {
    %c0_i32 = arith.constant 0 : i32
    %c0_i32_0 = arith.constant 0 : i32
    return %arg0, %c0_i32 : i32, i32
  }
  func.func @transform_1(%arg0: i32) -> (i32, i32) {
    %c0_i32 = arith.constant 0 : i32
    %c0_i32_0 = arith.constant 0 : i32
    %c0_i32_1 = arith.constant 0 : i32
    return %c0_i32, %c0_i32_0 : i32, i32
  }
  func.func @transform_2(%arg0: i32) -> (i32, i32) {
    %c0_i32 = arith.constant 0 : i32
    %c0_i32_0 = arith.constant 0 : i32
    %c0_i32_1 = arith.constant 0 : i32
    return %c0_i32, %c0_i32_0 : i32, i32
  }
  func.func @transform_3(%arg0: i32) -> (i32, i32) {
    %c0_i32 = arith.constant 0 : i32
    %c0_i32_0 = arith.constant 0 : i32
    return %arg0, %c0_i32 : i32, i32
  }
}

module attributes {stable_mosaic.version = 11 : i64} {
  func.func @_mm_bias_act_kernel(%arg0: i32, %arg1: memref<32x8xbf16, #tpu.memory_space<vmem>>, %arg2: memref<8x32xbf16, #tpu.memory_space<vmem>>, %arg3: memref<1x32xf32, #tpu.memory_space<vmem>>, %arg4: memref<32x32xf32, #tpu.memory_space<vmem>>) attributes {dimension_semantics = [#tpu.dimension_semantics<parallel>], iteration_bounds = array<i64: 1>, scalar_prefetch = 0 : i64, scratch_operands = 0 : i64, tpu.core_type = #tpu.core_type<tc>, window_params = [{transform_indices = @transform_0, window_bounds = array<i64: 32, 8>}, {pipeline_mode = #tpu.pipeline_mode<synchronous>, transform_indices = @transform_1, window_bounds = array<i64: 8, 32>}, {pipeline_mode = #tpu.pipeline_mode<synchronous>, transform_indices = @transform_2, window_bounds = array<i64: 1, 32>}, {transform_indices = @transform_3, window_bounds = array<i64: 32, 32>}]} {
    %c0 = arith.constant 0 : index
    %c0_0 = arith.constant 0 : index
    %0 = vector.load %arg1[%c0, %c0_0] : memref<32x8xbf16, #tpu.memory_space<vmem>>, vector<32x8xbf16>
    %c0_1 = arith.constant 0 : index
    %c0_2 = arith.constant 0 : index
    %1 = vector.load %arg2[%c0_1, %c0_2] : memref<8x32xbf16, #tpu.memory_space<vmem>>, vector<8x32xbf16>
    %cst = arith.constant dense<0.000000e+00> : vector<32x32xf32>
    %2 = tpu.matmul %0, %1, %cst {dimension_numbers = #tpu.dot_dimension_numbers<[1], [0], [0], [1], [0, 0, 1, 1], [], []>} : vector<32x8xbf16>, vector<8x32xbf16>, vector<32x32xf32> -> vector<32x32xf32>
    %c0_3 = arith.constant 0 : index
    %c0_4 = arith.constant 0 : index
    %3 = vector.load %arg3[%c0_3, %c0_4] : memref<1x32xf32, #tpu.memory_space<vmem>>, vector<1x32xf32>
    %4 = vector.broadcast %3 : vector<1x32xf32> to vector<32x32xf32>
    %5 = arith.addf %2, %4 : vector<32x32xf32>
    %c0_5 = arith.constant 0 : index
    %c0_6 = arith.constant 0 : index
    %6 = vector.load %arg4[%c0_5, %c0_6] : memref<32x32xf32, #tpu.memory_space<vmem>>, vector<32x32xf32>
    tpu.vector_store %arg4[%c0_5, %c0_6], %5 {strides = array<i32>} : memref<32x32xf32, #tpu.memory_space<vmem>>, vector<32x32xf32>,
    return
  }
  func.func @transform_0(%arg0: i32) -> (i32, i32) {
    %c0_i32 = arith.constant 0 : i32
    %c0_i32_0 = arith.constant 0 : i32
    return %arg0, %c0_i32 : i32, i32
  }
  func.func @transform_1(%arg0: i32) -> (i32, i32) {
    %c0_i32 = arith.constant 0 : i32
    %c0_i32_0 = arith.constant 0 : i32
    %c0_i32_1 = arith.constant 0 : i32
    return %c0_i32, %c0_i32_0 : i32, i32
  }
  func.func @transform_2(%arg0: i32) -> (i32, i32) {
    %c0_i32 = arith.constant 0 : i32
    %c0_i32_0 = arith.constant 0 : i32
    %c0_i32_1 = arith.constant 0 : i32
    return %c0_i32, %c0_i32_0 : i32, i32
  }
  func.func @transform_3(%arg0: i32) -> (i32, i32) {
    %c0_i32 = arith.constant 0 : i32
    %c0_i32_0 = arith.constant 0 : i32
    return %arg0, %c0_i32 : i32, i32
  }
}

module attributes {stable_mosaic.version = 11 : i64} {
  func.func @_mm_bias_act_kernel(%arg0: i32, %arg1: memref<32x160xbf16, #tpu.memory_space<vmem>>, %arg2: memref<160x64xbf16, #tpu.memory_space<vmem>>, %arg3: memref<1x64xf32, #tpu.memory_space<vmem>>, %arg4: memref<32x32xf32, #tpu.memory_space<vmem>>) attributes {dimension_semantics = [#tpu.dimension_semantics<parallel>], iteration_bounds = array<i64: 1>, scalar_prefetch = 0 : i64, scratch_operands = 0 : i64, tpu.core_type = #tpu.core_type<tc>, window_params = [{transform_indices = @transform_0, window_bounds = array<i64: 32, 160>}, {pipeline_mode = #tpu.pipeline_mode<synchronous>, transform_indices = @transform_1, window_bounds = array<i64: 160, 64>}, {pipeline_mode = #tpu.pipeline_mode<synchronous>, transform_indices = @transform_2, window_bounds = array<i64: 1, 64>}, {transform_indices = @transform_3, window_bounds = array<i64: 32, 32>}]} {
    %c0 = arith.constant 0 : index
    %c0_0 = arith.constant 0 : index
    %0 = vector.load %arg1[%c0, %c0_0] : memref<32x160xbf16, #tpu.memory_space<vmem>>, vector<32x160xbf16>
    %c0_1 = arith.constant 0 : index
    %c0_2 = arith.constant 0 : index
    %1 = vector.load %arg2[%c0_1, %c0_2] : memref<160x64xbf16, #tpu.memory_space<vmem>>, vector<160x64xbf16>
    %cst = arith.constant dense<0.000000e+00> : vector<32x64xf32>
    %2 = tpu.matmul %0, %1, %cst {dimension_numbers = #tpu.dot_dimension_numbers<[1], [0], [0], [1], [0, 0, 1, 1], [], []>} : vector<32x160xbf16>, vector<160x64xbf16>, vector<32x64xf32> -> vector<32x64xf32>
    %c0_3 = arith.constant 0 : index
    %c0_4 = arith.constant 0 : index
    %3 = vector.load %arg3[%c0_3, %c0_4] : memref<1x64xf32, #tpu.memory_space<vmem>>, vector<1x64xf32>
    %4 = vector.broadcast %3 : vector<1x64xf32> to vector<32x64xf32>
    %5 = arith.addf %2, %4 : vector<32x64xf32>
    %6 = vector.extract_strided_slice %5 {offsets = [0, 0], sizes = [32, 32], strides = [1, 1]} : vector<32x64xf32> to vector<32x32xf32>
    %7 = math.tanh %6 : vector<32x32xf32>
    %8 = vector.extract_strided_slice %5 {offsets = [0, 32], sizes = [32, 32], strides = [1, 1]} : vector<32x64xf32> to vector<32x32xf32>
    %9 = arith.negf %8 : vector<32x32xf32>
    %10 = math.exp %9 : vector<32x32xf32>
    %cst_5 = arith.constant 1.000000e+00 : f32
    %11 = vector.broadcast %cst_5 : f32 to vector<32x32xf32>
    %12 = arith.addf %11, %10 : vector<32x32xf32>
    %13 = arith.divf %11, %12 : vector<32x32xf32>
    %14 = arith.mulf %7, %13 : vector<32x32xf32>
    %c0_6 = arith.constant 0 : index
    %c0_7 = arith.constant 0 : index
    %15 = vector.load %arg4[%c0_6, %c0_7] : memref<32x32xf32, #tpu.memory_space<vmem>>, vector<32x32xf32>
    tpu.vector_store %arg4[%c0_6, %c0_7], %14 {strides = array<i32>} : memref<32x32xf32, #tpu.memory_space<vmem>>, vector<32x32xf32>,
    return
  }
  func.func @transform_0(%arg0: i32) -> (i32, i32) {
    %c0_i32 = arith.constant 0 : i32
    %c0_i32_0 = arith.constant 0 : i32
    return %arg0, %c0_i32 : i32, i32
  }
  func.func @transform_1(%arg0: i32) -> (i32, i32) {
    %c0_i32 = arith.constant 0 : i32
    %c0_i32_0 = arith.constant 0 : i32
    %c0_i32_1 = arith.constant 0 : i32
    return %c0_i32, %c0_i32_0 : i32, i32
  }
  func.func @transform_2(%arg0: i32) -> (i32, i32) {
    %c0_i32 = arith.constant 0 : i32
    %c0_i32_0 = arith.constant 0 : i32
    %c0_i32_1 = arith.constant 0 : i32
    return %c0_i32, %c0_i32_0 : i32, i32
  }
  func.func @transform_3(%arg0: i32) -> (i32, i32) {
    %c0_i32 = arith.constant 0 : i32
    %c0_i32_0 = arith.constant 0 : i32
    return %arg0, %c0_i32 : i32, i32
  }
}

module attributes {stable_mosaic.version = 11 : i64} {
  func.func @_mm_bias_act_kernel(%arg0: i32, %arg1: memref<32x32xbf16, #tpu.memory_space<vmem>>, %arg2: memref<32x64xbf16, #tpu.memory_space<vmem>>, %arg3: memref<1x64xf32, #tpu.memory_space<vmem>>, %arg4: memref<32x64xf32, #tpu.memory_space<vmem>>) attributes {dimension_semantics = [#tpu.dimension_semantics<parallel>], iteration_bounds = array<i64: 1>, scalar_prefetch = 0 : i64, scratch_operands = 0 : i64, tpu.core_type = #tpu.core_type<tc>, window_params = [{transform_indices = @transform_0, window_bounds = array<i64: 32, 32>}, {pipeline_mode = #tpu.pipeline_mode<synchronous>, transform_indices = @transform_1, window_bounds = array<i64: 32, 64>}, {pipeline_mode = #tpu.pipeline_mode<synchronous>, transform_indices = @transform_2, window_bounds = array<i64: 1, 64>}, {transform_indices = @transform_3, window_bounds = array<i64: 32, 64>}]} {
    %c0 = arith.constant 0 : index
    %c0_0 = arith.constant 0 : index
    %0 = vector.load %arg1[%c0, %c0_0] : memref<32x32xbf16, #tpu.memory_space<vmem>>, vector<32x32xbf16>
    %c0_1 = arith.constant 0 : index
    %c0_2 = arith.constant 0 : index
    %1 = vector.load %arg2[%c0_1, %c0_2] : memref<32x64xbf16, #tpu.memory_space<vmem>>, vector<32x64xbf16>
    %cst = arith.constant dense<0.000000e+00> : vector<32x64xf32>
    %2 = tpu.matmul %0, %1, %cst {dimension_numbers = #tpu.dot_dimension_numbers<[1], [0], [0], [1], [0, 0, 1, 1], [], []>} : vector<32x32xbf16>, vector<32x64xbf16>, vector<32x64xf32> -> vector<32x64xf32>
    %c0_3 = arith.constant 0 : index
    %c0_4 = arith.constant 0 : index
    %3 = vector.load %arg3[%c0_3, %c0_4] : memref<1x64xf32, #tpu.memory_space<vmem>>, vector<1x64xf32>
    %4 = vector.broadcast %3 : vector<1x64xf32> to vector<32x64xf32>
    %5 = arith.addf %2, %4 : vector<32x64xf32>
    %c0_5 = arith.constant 0 : index
    %c0_6 = arith.constant 0 : index
    %6 = vector.load %arg4[%c0_5, %c0_6] : memref<32x64xf32, #tpu.memory_space<vmem>>, vector<32x64xf32>
    tpu.vector_store %arg4[%c0_5, %c0_6], %5 {strides = array<i32>} : memref<32x64xf32, #tpu.memory_space<vmem>>, vector<32x64xf32>,
    return
  }
  func.func @transform_0(%arg0: i32) -> (i32, i32) {
    %c0_i32 = arith.constant 0 : i32
    %c0_i32_0 = arith.constant 0 : i32
    return %arg0, %c0_i32 : i32, i32
  }
  func.func @transform_1(%arg0: i32) -> (i32, i32) {
    %c0_i32 = arith.constant 0 : i32
    %c0_i32_0 = arith.constant 0 : i32
    %c0_i32_1 = arith.constant 0 : i32
    return %c0_i32, %c0_i32_0 : i32, i32
  }
  func.func @transform_2(%arg0: i32) -> (i32, i32) {
    %c0_i32 = arith.constant 0 : i32
    %c0_i32_0 = arith.constant 0 : i32
    %c0_i32_1 = arith.constant 0 : i32
    return %c0_i32, %c0_i32_0 : i32, i32
  }
  func.func @transform_3(%arg0: i32) -> (i32, i32) {
    %c0_i32 = arith.constant 0 : i32
    %c0_i32_0 = arith.constant 0 : i32
    return %arg0, %c0_i32 : i32, i32
  }
}

module attributes {stable_mosaic.version = 11 : i64} {
  func.func @_mm_bias_act_kernel(%arg0: i32, %arg1: memref<32x32xbf16, #tpu.memory_space<vmem>>, %arg2: memref<32x32xbf16, #tpu.memory_space<vmem>>, %arg3: memref<1x32xf32, #tpu.memory_space<vmem>>, %arg4: memref<32x32xf32, #tpu.memory_space<vmem>>) attributes {dimension_semantics = [#tpu.dimension_semantics<parallel>], iteration_bounds = array<i64: 1>, scalar_prefetch = 0 : i64, scratch_operands = 0 : i64, tpu.core_type = #tpu.core_type<tc>, window_params = [{transform_indices = @transform_0, window_bounds = array<i64: 32, 32>}, {pipeline_mode = #tpu.pipeline_mode<synchronous>, transform_indices = @transform_1, window_bounds = array<i64: 32, 32>}, {pipeline_mode = #tpu.pipeline_mode<synchronous>, transform_indices = @transform_2, window_bounds = array<i64: 1, 32>}, {transform_indices = @transform_3, window_bounds = array<i64: 32, 32>}]} {
    %c0 = arith.constant 0 : index
    %c0_0 = arith.constant 0 : index
    %0 = vector.load %arg1[%c0, %c0_0] : memref<32x32xbf16, #tpu.memory_space<vmem>>, vector<32x32xbf16>
    %c0_1 = arith.constant 0 : index
    %c0_2 = arith.constant 0 : index
    %1 = vector.load %arg2[%c0_1, %c0_2] : memref<32x32xbf16, #tpu.memory_space<vmem>>, vector<32x32xbf16>
    %cst = arith.constant dense<0.000000e+00> : vector<32x32xf32>
    %2 = tpu.matmul %0, %1, %cst {dimension_numbers = #tpu.dot_dimension_numbers<[1], [0], [0], [1], [0, 0, 1, 1], [], []>} : vector<32x32xbf16>, vector<32x32xbf16>, vector<32x32xf32> -> vector<32x32xf32>
    %c0_3 = arith.constant 0 : index
    %c0_4 = arith.constant 0 : index
    %3 = vector.load %arg3[%c0_3, %c0_4] : memref<1x32xf32, #tpu.memory_space<vmem>>, vector<1x32xf32>
    %4 = vector.broadcast %3 : vector<1x32xf32> to vector<32x32xf32>
    %5 = arith.addf %2, %4 : vector<32x32xf32>
    %c0_5 = arith.constant 0 : index
    %c0_6 = arith.constant 0 : index
    %6 = vector.load %arg4[%c0_5, %c0_6] : memref<32x32xf32, #tpu.memory_space<vmem>>, vector<32x32xf32>
    tpu.vector_store %arg4[%c0_5, %c0_6], %5 {strides = array<i32>} : memref<32x32xf32, #tpu.memory_space<vmem>>, vector<32x32xf32>,
    return
  }
  func.func @transform_0(%arg0: i32) -> (i32, i32) {
    %c0_i32 = arith.constant 0 : i32
    %c0_i32_0 = arith.constant 0 : i32
    return %arg0, %c0_i32 : i32, i32
  }
  func.func @transform_1(%arg0: i32) -> (i32, i32) {
    %c0_i32 = arith.constant 0 : i32
    %c0_i32_0 = arith.constant 0 : i32
    %c0_i32_1 = arith.constant 0 : i32
    return %c0_i32, %c0_i32_0 : i32, i32
  }
  func.func @transform_2(%arg0: i32) -> (i32, i32) {
    %c0_i32 = arith.constant 0 : i32
    %c0_i32_0 = arith.constant 0 : i32
    %c0_i32_1 = arith.constant 0 : i32
    return %c0_i32, %c0_i32_0 : i32, i32
  }
  func.func @transform_3(%arg0: i32) -> (i32, i32) {
    %c0_i32 = arith.constant 0 : i32
    %c0_i32_0 = arith.constant 0 : i32
    return %arg0, %c0_i32 : i32, i32
  }
}

module attributes {stable_mosaic.version = 11 : i64} {
  func.func @_mm_bias_act_kernel(%arg0: i32, %arg1: memref<32x32xbf16, #tpu.memory_space<vmem>>, %arg2: memref<32x16xbf16, #tpu.memory_space<vmem>>, %arg3: memref<1x16xf32, #tpu.memory_space<vmem>>, %arg4: memref<32x16xf32, #tpu.memory_space<vmem>>) attributes {dimension_semantics = [#tpu.dimension_semantics<parallel>], iteration_bounds = array<i64: 1>, scalar_prefetch = 0 : i64, scratch_operands = 0 : i64, tpu.core_type = #tpu.core_type<tc>, window_params = [{transform_indices = @transform_0, window_bounds = array<i64: 32, 32>}, {pipeline_mode = #tpu.pipeline_mode<synchronous>, transform_indices = @transform_1, window_bounds = array<i64: 32, 16>}, {pipeline_mode = #tpu.pipeline_mode<synchronous>, transform_indices = @transform_2, window_bounds = array<i64: 1, 16>}, {transform_indices = @transform_3, window_bounds = array<i64: 32, 16>}]} {
    %c0 = arith.constant 0 : index
    %c0_0 = arith.constant 0 : index
    %0 = vector.load %arg1[%c0, %c0_0] : memref<32x32xbf16, #tpu.memory_space<vmem>>, vector<32x32xbf16>
    %c0_1 = arith.constant 0 : index
    %c0_2 = arith.constant 0 : index
    %1 = vector.load %arg2[%c0_1, %c0_2] : memref<32x16xbf16, #tpu.memory_space<vmem>>, vector<32x16xbf16>
    %cst = arith.constant dense<0.000000e+00> : vector<32x16xf32>
    %2 = tpu.matmul %0, %1, %cst {dimension_numbers = #tpu.dot_dimension_numbers<[1], [0], [0], [1], [0, 0, 1, 1], [], []>} : vector<32x32xbf16>, vector<32x16xbf16>, vector<32x16xf32> -> vector<32x16xf32>
    %c0_3 = arith.constant 0 : index
    %c0_4 = arith.constant 0 : index
    %3 = vector.load %arg3[%c0_3, %c0_4] : memref<1x16xf32, #tpu.memory_space<vmem>>, vector<1x16xf32>
    %4 = vector.broadcast %3 : vector<1x16xf32> to vector<32x16xf32>
    %5 = arith.addf %2, %4 : vector<32x16xf32>
    %c0_5 = arith.constant 0 : index
    %c0_6 = arith.constant 0 : index
    %6 = vector.load %arg4[%c0_5, %c0_6] : memref<32x16xf32, #tpu.memory_space<vmem>>, vector<32x16xf32>
    tpu.vector_store %arg4[%c0_5, %c0_6], %5 {strides = array<i32>} : memref<32x16xf32, #tpu.memory_space<vmem>>, vector<32x16xf32>,
    return
  }
  func.func @transform_0(%arg0: i32) -> (i32, i32) {
    %c0_i32 = arith.constant 0 : i32
    %c0_i32_0 = arith.constant 0 : i32
    return %arg0, %c0_i32 : i32, i32
  }
  func.func @transform_1(%arg0: i32) -> (i32, i32) {
    %c0_i32 = arith.constant 0 : i32
    %c0_i32_0 = arith.constant 0 : i32
    %c0_i32_1 = arith.constant 0 : i32
    return %c0_i32, %c0_i32_0 : i32, i32
  }
  func.func @transform_2(%arg0: i32) -> (i32, i32) {
    %c0_i32 = arith.constant 0 : i32
    %c0_i32_0 = arith.constant 0 : i32
    %c0_i32_1 = arith.constant 0 : i32
    return %c0_i32, %c0_i32_0 : i32, i32
  }
  func.func @transform_3(%arg0: i32) -> (i32, i32) {
    %c0_i32 = arith.constant 0 : i32
    %c0_i32_0 = arith.constant 0 : i32
    return %arg0, %c0_i32 : i32, i32
  }
}

module attributes {stable_mosaic.version = 11 : i64} {
  func.func @_couple_kernel(%arg0: i32, %arg1: memref<32x16xf32, #tpu.memory_space<vmem>>, %arg2: memref<32x8xf32, #tpu.memory_space<vmem>>, %arg3: memref<32x1xf32, #tpu.memory_space<vmem>>, %arg4: memref<32x8xf32, #tpu.memory_space<vmem>>, %arg5: memref<32x8xf32, #tpu.memory_space<vmem>>) attributes {dimension_semantics = [#tpu.dimension_semantics<parallel>], iteration_bounds = array<i64: 1>, scalar_prefetch = 0 : i64, scratch_operands = 0 : i64, tpu.core_type = #tpu.core_type<tc>, window_params = [{transform_indices = @transform_0, window_bounds = array<i64: 32, 16>}, {transform_indices = @transform_1, window_bounds = array<i64: 32, 8>}, {transform_indices = @transform_2, window_bounds = array<i64: 32, 1>}, {transform_indices = @transform_3, window_bounds = array<i64: 32, 8>}, {transform_indices = @transform_4, window_bounds = array<i64: 32, 8>}]} {
    %c0 = arith.constant 0 : index
    %c0_0 = arith.constant 0 : index
    %0 = vector.load %arg3[%c0, %c0_0] : memref<32x1xf32, #tpu.memory_space<vmem>>, vector<32x1xf32>
    %c0_1 = arith.constant 0 : index
    %c0_2 = arith.constant 0 : index
    %1 = vector.load %arg1[%c0_1, %c0_2] : memref<32x16xf32, #tpu.memory_space<vmem>>, vector<32x8xf32>
    %2 = vector.broadcast %0 : vector<32x1xf32> to vector<32x8xf32>
    %3 = arith.mulf %1, %2 : vector<32x8xf32>
    %c0_3 = arith.constant 0 : index
    %c8 = arith.constant 8 : index
    %4 = vector.load %arg1[%c0_3, %c8] : memref<32x16xf32, #tpu.memory_space<vmem>>, vector<32x8xf32>
    %5 = vector.broadcast %0 : vector<32x1xf32> to vector<32x8xf32>
    %6 = arith.mulf %4, %5 : vector<32x8xf32>
    %c0_4 = arith.constant 0 : index
    %c0_5 = arith.constant 0 : index
    %7 = vector.load %arg5[%c0_4, %c0_5] : memref<32x8xf32, #tpu.memory_space<vmem>>, vector<32x8xf32>
    tpu.vector_store %arg5[%c0_4, %c0_5], %6 {strides = array<i32>} : memref<32x8xf32, #tpu.memory_space<vmem>>, vector<32x8xf32>,
    %c0_6 = arith.constant 0 : index
    %c0_7 = arith.constant 0 : index
    %8 = vector.load %arg2[%c0_6, %c0_7] : memref<32x8xf32, #tpu.memory_space<vmem>>, vector<32x8xf32>
    %9 = math.exp %6 : vector<32x8xf32>
    %10 = arith.mulf %8, %9 : vector<32x8xf32>
    %11 = vector.broadcast %0 : vector<32x1xf32> to vector<32x8xf32>
    %12 = arith.mulf %10, %11 : vector<32x8xf32>
    %13 = arith.addf %3, %12 : vector<32x8xf32>
    %c0_8 = arith.constant 0 : index
    %c0_9 = arith.constant 0 : index
    %14 = vector.load %arg4[%c0_8, %c0_9] : memref<32x8xf32, #tpu.memory_space<vmem>>, vector<32x8xf32>
    tpu.vector_store %arg4[%c0_8, %c0_9], %13 {strides = array<i32>} : memref<32x8xf32, #tpu.memory_space<vmem>>, vector<32x8xf32>,
    return
  }
  func.func @transform_0(%arg0: i32) -> (i32, i32) {
    %c0_i32 = arith.constant 0 : i32
    %c0_i32_0 = arith.constant 0 : i32
    return %arg0, %c0_i32 : i32, i32
  }
  func.func @transform_1(%arg0: i32) -> (i32, i32) {
    %c0_i32 = arith.constant 0 : i32
    %c0_i32_0 = arith.constant 0 : i32
    return %arg0, %c0_i32 : i32, i32
  }
  func.func @transform_2(%arg0: i32) -> (i32, i32) {
    %c0_i32 = arith.constant 0 : i32
    %c0_i32_0 = arith.constant 0 : i32
    return %arg0, %c0_i32 : i32, i32
  }
  func.func @transform_3(%arg0: i32) -> (i32, i32) {
    %c0_i32 = arith.constant 0 : i32
    %c0_i32_0 = arith.constant 0 : i32
    return %arg0, %c0_i32 : i32, i32
  }
  func.func @transform_4(%arg0: i32) -> (i32, i32) {
    %c0_i32 = arith.constant 0 : i32
    %c0_i32_0 = arith.constant 0 : i32
    return %arg0, %c0_i32 : i32, i32
  }
}

</mosaic_0001>

<llo_original>
// kernel: _lambda_.30
$region0: #{_lambda_.30}
  #allocation0 [shape = 'u32[]', space=smem, size = 0x4, offset = 0x4, fixed_abs, tag = 'smem constant byte address 0x4 - core index']
  #allocation1 [shape = 'u32[72,128]{1,0:T(1,128)}', space=vmem, size = 0x9000, scoped, tag = 'internal scratch']
  %s0 = inlined_call_operand.vmem [shape: f32[2,2,16,4], index: 0, kind: input, shape index: {}]
  %s1 = inlined_call_operand.vmem [shape: f32[2,2,16,4], index: 1, kind: input, shape index: {}]
  %s2 = inlined_call_operand.vmem [shape: f32[2,2,16,4], index: 2, kind: input, shape index: {}]
  %s3 = inlined_call_operand.vmem [shape: f32[2,16,16], index: 3, kind: input, shape index: {}]
  %s4 = inlined_call_operand.vmem [shape: f32[2,2,16,4], index: 4, kind: output, shape index: {}]
  %s5 = sld [smem:[#allocation0]]
  $region49: #{_lambda_.30} parent=0
    _
  %s7 = ssub.s32 1, %s5
  %s8 = scalar_select 0, %s7, %s5
  loop: start=0, step=1, limit=6
  $region2: #{_lambda_.30} parent=0 // loop_pre_header
    _
  $region3: #{_lambda_.30} parent=0 // loop_header
    %s10 = sphi 0, %s14
    %p11 = scmp.ge.s32.totalorder %s10, 6
    %s17 = sphi 0, %s29
    %s18 = sphi 0, %s25
    %s19 = sphi 0, %s17
    %s20 = sphi 0, %s18
    %s21 = sphi 0, %s19
    %s22 = sphi 0, %s20
    %s34 = sphi 0, %s36
    %s37 = sphi 0, %s34
    %s38 = sphi 0, %s37
    %s54 = sphi 0, %s38
    %s62 = sphi 0, %s64
    %s65 = sphi 0, %s62
    %s66 = sphi 0, %s65
    %s82 = sphi 0, %s66
    %s90 = sphi 0, %s92
    %s93 = sphi 0, %s90
    %s94 = sphi 0, %s93
    %s110 = sphi 0, %s94
    %s116 = sphi 0, %s118
    %s119 = sphi 0, %s116
    %s120 = sphi 0, %s119
    %s136 = sphi 0, %s120
    %s144 = sphi 0, %s146
    %s147 = sphi 0, %s144
    %s148 = sphi 0, %s147
    %s164 = sphi 0, %s148
  $region4: #{_lambda_.30} parent=0 // loop_header_branch
    %13 = sbr.rel (%p11) target = $region8
  $region5: #{_lambda_.30} parent=0 // loop_body
    %s15 = ssub.s32 %s10, 1
    %s16 = ssub.s32 %s10, 2
    %s23 = sadd.s32 1, %s18
    %p24 = scmp.ge.s32.totalorder %s23, 2
    %s25 = scalar_select %p24, 0, %s23
    %s26 = sadd.s32 1, %s17
    %s27 = scalar_select %p24, %s26, %s17
    %p28 = scmp.ge.s32.totalorder %s27, 2
    %s29 = scalar_select %p28, 0, %s27
    %s30 = ssub.s32 %s17, %s29
    %s31 = ssub.s32 %s18, %s25
    %s32 = sor.u32 %s30, %s31
    %p33 = scmp.eq.s32.totalorder %s32, 0
    %s35 = sadd.s32 %s34, 1
    %s36 = scalar_select %p33, %s34, %s35
    %p39 = pneg %p33
    %p40 = scmp.eq.s32.totalorder %s10, 3
    %p41 = por %p39, %p40
    %p42 = scmp.ne.s32.totalorder %s34, %s37
    %p43 = scmp.eq.s32.totalorder %s10, 0
    %p44 = por %p42, %p43
    %p45 = scmp.ne.s32.totalorder %s34, %s37
    %p46 = scmp.eq.s32.totalorder %s15, 3
    %p47 = por %p45, %p46
    %p48 = scmp.ne.s32.totalorder %s37, %s38
    %p49 = scmp.eq.s32.totalorder %s15, 0
    %p50 = por %p48, %p49
    %p51 = scmp.ne.s32.totalorder %s37, %s38
    %p52 = scmp.eq.s32.totalorder %s16, 3
    %p53 = por %p51, %p52
    %p55 = scmp.ne.s32.totalorder %s38, %s54
    %p56 = scmp.eq.s32.totalorder %s16, 0
    %p57 = por %p55, %p56
    %s58 = ssub.s32 %s17, %s29
    %s59 = ssub.s32 %s18, %s25
    %s60 = sor.u32 %s58, %s59
    %p61 = scmp.eq.s32.totalorder %s60, 0
    %s63 = sadd.s32 %s62, 1
    %s64 = scalar_select %p61, %s62, %s63
    %p67 = pneg %p61
    %p68 = scmp.eq.s32.totalorder %s10, 3
    %p69 = por %p67, %p68
    %p70 = scmp.ne.s32.totalorder %s62, %s65
    %p71 = scmp.eq.s32.totalorder %s10, 0
    %p72 = por %p70, %p71
    %p73 = scmp.ne.s32.totalorder %s62, %s65
    %p74 = scmp.eq.s32.totalorder %s15, 3
    %p75 = por %p73, %p74
    %p76 = scmp.ne.s32.totalorder %s65, %s66
    %p77 = scmp.eq.s32.totalorder %s15, 0
    %p78 = por %p76, %p77
    %p79 = scmp.ne.s32.totalorder %s65, %s66
    %p80 = scmp.eq.s32.totalorder %s16, 3
    %p81 = por %p79, %p80
    %p83 = scmp.ne.s32.totalorder %s66, %s82
    %p84 = scmp.eq.s32.totalorder %s16, 0
    %p85 = por %p83, %p84
    %s86 = ssub.s32 %s17, %s29
    %s87 = ssub.s32 %s18, %s25
    %s88 = sor.u32 %s86, %s87
    %p89 = scmp.eq.s32.totalorder %s88, 0
    %s91 = sadd.s32 %s90, 1
    %s92 = scalar_select %p89, %s90, %s91
    %p95 = pneg %p89
    %p96 = scmp.eq.s32.totalorder %s10, 3
    %p97 = por %p95, %p96
    %p98 = scmp.ne.s32.totalorder %s90, %s93
    %p99 = scmp.eq.s32.totalorder %s10, 0
    %p100 = por %p98, %p99
    %p101 = scmp.ne.s32.totalorder %s90, %s93
    %p102 = scmp.eq.s32.totalorder %s15, 3
    %p103 = por %p101, %p102
    %p104 = scmp.ne.s32.totalorder %s93, %s94
    %p105 = scmp.eq.s32.totalorder %s15, 0
    %p106 = por %p104, %p105
    %p107 = scmp.ne.s32.totalorder %s93, %s94
    %p108 = scmp.eq.s32.totalorder %s16, 3
    %p109 = por %p107, %p108
    %p111 = scmp.ne.s32.totalorder %s94, %s110
    %p112 = scmp.eq.s32.totalorder %s16, 0
    %p113 = por %p111, %p112
    %s114 = ssub.s32 %s17, %s29
    %p115 = scmp.eq.s32.totalorder %s114, 0
    %s117 = sadd.s32 %s116, 1
    %s118 = scalar_select %p115, %s116, %s117
    %p121 = pneg %p115
    %p122 = scmp.eq.s32.totalorder %s10, 3
    %p123 = por %p121, %p122
    %p124 = scmp.ne.s32.totalorder %s116, %s119
    %p125 = scmp.eq.s32.totalorder %s10, 0
    %p126 = por %p124, %p125
    %p127 = scmp.ne.s32.totalorder %s116, %s119
    %p128 = scmp.eq.s32.totalorder %s15, 3
    %p129 = por %p127, %p128
    %p130 = scmp.ne.s32.totalorder %s119, %s120
    %p131 = scmp.eq.s32.totalorder %s15, 0
    %p132 = por %p130, %p131
    %p133 = scmp.ne.s32.totalorder %s119, %s120
    %p134 = scmp.eq.s32.totalorder %s16, 3
    %p135 = por %p133, %p134
    %p137 = scmp.ne.s32.totalorder %s120, %s136
    %p138 = scmp.eq.s32.totalorder %s16, 0
    %p139 = por %p137, %p138
    %s140 = ssub.s32 %s17, %s29
    %s141 = ssub.s32 %s18, %s25
    %s142 = sor.u32 %s140, %s141
    %p143 = scmp.eq.s32.totalorder %s142, 0
    %s145 = sadd.s32 %s144, 1
    %s146 = scalar_select %p143, %s144, %s145
    %p149 = pneg %p143
    %p150 = scmp.eq.s32.totalorder %s10, 3
    %p151 = por %p149, %p150
    %p152 = scmp.ne.s32.totalorder %s144, %s147
    %p153 = scmp.eq.s32.totalorder %s10, 0
    %p154 = por %p152, %p153
    %p155 = scmp.ne.s32.totalorder %s144, %s147
    %p156 = scmp.eq.s32.totalorder %s15, 3
    %p157 = por %p155, %p156
    %p158 = scmp.ne.s32.totalorder %s147, %s148
    %p159 = scmp.eq.s32.totalorder %s15, 0
    %p160 = por %p158, %p159
    %p161 = scmp.ne.s32.totalorder %s147, %s148
    %p162 = scmp.eq.s32.totalorder %s16, 3
    %p163 = por %p161, %p162
    %p165 = scmp.ne.s32.totalorder %s148, %s164
    %p166 = scmp.eq.s32.totalorder %s16, 0
    %p167 = por %p165, %p166
    %p168 = scmp.le.s32.totalorder 1, %s10
    %p169 = scmp.lt.s32.totalorder %s10, 5
    %p170 = pnand %p168, %p169
    %p171 = pneg %p170
    // Predicated region
    $region9: #{_lambda_.30} parent=5 // pred_check
      _
    $region10: #{_lambda_.30} parent=5 // pred_check_branch
      %173 = sbr.rel (%p170) target = $region12
    $region11: #{_lambda_.30} parent=5 // pred_region
      %s174 = ssub.s32 %s10, 1
    $region12: #{_lambda_.30} parent=5 // pred_fallthru
      _
    %p175 = scmp.lt.s32.totalorder %s10, 4
    // Predicated region
    $region13: #{_lambda_.30} parent=5 // pred_check
      %p176 = pneg %p175
    $region14: #{_lambda_.30} parent=5 // pred_check_branch
      %178 = sbr.rel (%p176) target = $region16
    $region15: #{_lambda_.30} parent=5 // pred_region
      // Predicated region
      $region17: #{_lambda_.30} parent=15 // pred_check
        %p179 = pneg %p44
      $region18: #{_lambda_.30} parent=15 // pred_check_branch
        %181 = sbr.rel (%p179) target = $region20
      $region19: #{_lambda_.30} parent=15 // pred_region
        %p182 = scmp.lt.s32.totalorder %s17, 1
        %s183 = scalar_select %p182, %s17, 1
        %p184 = scmp.lt.s32.totalorder %s18, 1
        %s185 = scalar_select %p184, %s18, 1
        %s186 = smul.addr %s185, 2
        %s187 = smul.addr %s183, 4
        %s188 = sadd.s32 %s186, %s187
        %s189 = smul.addr %s188, 8
        %s190 = scalar_lea.vmem %s0, %s189
      $region20: #{_lambda_.30} parent=15 // pred_fallthru
        _
      // Predicated region
      $region21: #{_lambda_.30} parent=15 // pred_check
        %p191 = pneg %p72
      $region22: #{_lambda_.30} parent=15 // pred_check_branch
        %193 = sbr.rel (%p191) target = $region24
      $region23: #{_lambda_.30} parent=15 // pred_region
        %p194 = scmp.lt.s32.totalorder %s17, 1
        %s195 = scalar_select %p194, %s17, 1
        %p196 = scmp.lt.s32.totalorder %s18, 1
        %s197 = scalar_select %p196, %s18, 1
        %s198 = smul.addr %s197, 2
        %s199 = smul.addr %s195, 4
        %s200 = sadd.s32 %s198, %s199
        %s201 = smul.addr %s200, 8
        %s202 = scalar_lea.vmem %s1, %s201
      $region24: #{_lambda_.30} parent=15 // pred_fallthru
        _
      // Predicated region
      $region25: #{_lambda_.30} parent=15 // pred_check
        %p203 = pneg %p100
      $region26: #{_lambda_.30} parent=15 // pred_check_branch
        %205 = sbr.rel (%p203) target = $region28
      $region27: #{_lambda_.30} parent=15 // pred_region
        %p206 = scmp.lt.s32.totalorder %s17, 1
        %s207 = scalar_select %p206, %s17, 1
        %p208 = scmp.lt.s32.totalorder %s18, 1
        %s209 = scalar_select %p208, %s18, 1
        %s210 = smul.addr %s209, 2
        %s211 = smul.addr %s207, 4
        %s212 = sadd.s32 %s210, %s211
        %s213 = smul.addr %s212, 8
        %s214 = scalar_lea.vmem %s2, %s213
      $region28: #{_lambda_.30} parent=15 // pred_fallthru
        _
      // Predicated region
      $region29: #{_lambda_.30} parent=15 // pred_check
        %p215 = pneg %p126
      $region30: #{_lambda_.30} parent=15 // pred_check_branch
        %217 = sbr.rel (%p215) target = $region32
      $region31: #{_lambda_.30} parent=15 // pred_region
        %p218 = scmp.lt.s32.totalorder %s17, 1
        %s219 = scalar_select %p218, %s17, 1
        %s220 = smul.addr %s219, 2
        %s221 = smul.addr %s220, 8
        %s222 = scalar_lea.vmem %s3, %s221
      $region32: #{_lambda_.30} parent=15 // pred_fallthru
        _
    $region16: #{_lambda_.30} parent=5 // pred_fallthru
      _
    %p223 = scmp.le.s32.totalorder 1, %s10
    %p224 = scmp.lt.s32.totalorder %s10, 5
    %p225 = pnand %p223, %p224
    %p226 = pneg %p225
    // Predicated region
    $region33: #{_lambda_.30} parent=5 // pred_check
      _
    $region34: #{_lambda_.30} parent=5 // pred_check_branch
      %228 = sbr.rel (%p225) target = $region36
    $region35: #{_lambda_.30} parent=5 // pred_region
      %s229 = ssub.s32 %s10, 1
      %p230 = scmp.lt.s32.totalorder %s19, 1
      %s231 = scalar_select %p230, %s19, 1
      %p232 = scmp.lt.s32.totalorder %s20, 1
      %s233 = scalar_select %p232, %s20, 1
      %s234 = smul.addr %s233, 2
      %s235 = smul.addr %s231, 4
      %s236 = sadd.s32 %s234, %s235
      %s237 = smul.addr %s236, 8
      %s238 = scalar_lea.vmem %s0, %s237
      %p239 = pneg %p50
      %p240 = pneg %p47
      %p241 = scmp.lt.s32.totalorder %s19, 1
      %s242 = scalar_select %p241, %s19, 1
      %p243 = scmp.lt.s32.totalorder %s20, 1
      %s244 = scalar_select %p243, %s20, 1
      %s245 = smul.addr %s244, 2
      %s246 = smul.addr %s242, 4
      %s247 = sadd.s32 %s245, %s246
      %s248 = smul.addr %s247, 8
      %s249 = scalar_lea.vmem %s1, %s248
      %p250 = pneg %p78
      %p251 = pneg %p75
      %p252 = scmp.lt.s32.totalorder %s19, 1
      %s253 = scalar_select %p252, %s19, 1
      %p254 = scmp.lt.s32.totalorder %s20, 1
      %s255 = scalar_select %p254, %s20, 1
      %s256 = smul.addr %s255, 2
      %s257 = smul.addr %s253, 4
      %s258 = sadd.s32 %s256, %s257
      %s259 = smul.addr %s258, 8
      %s260 = scalar_lea.vmem %s2, %s259
      %p261 = pneg %p106
      %p262 = pneg %p103
      %p263 = scmp.lt.s32.totalorder %s19, 1
      %s264 = scalar_select %p263, %s19, 1
      %s265 = smul.addr %s264, 2
      %s266 = smul.addr %s265, 8
      %s267 = scalar_lea.vmem %s3, %s266
      %p268 = pneg %p132
      %p269 = pneg %p129
      %p270 = pneg %p160
      %p271 = pneg %p157
      %p272 = scmp.lt.s32.totalorder %s19, 1
      %s273 = scalar_select %p272, %s19, 1
      %p274 = scmp.lt.s32.totalorder %s20, 1
      %s275 = scalar_select %p274, %s20, 1
      %s276 = smul.addr %s275, 2
      %s277 = smul.addr %s273, 4
      %s278 = sadd.s32 %s276, %s277
      %s279 = smul.addr %s278, 8
      %s280 = scalar_lea.vmem %s4, %s279
      %p281 = scmp.lt.s32.totalorder %s19, 1
      %s282 = scalar_select %p281, %s19, 1
      %p283 = scmp.lt.s32.totalorder %s20, 1
      %s284 = scalar_select %p283, %s20, 1
      %s285 = smul.addr %s284, 2
      %s286 = smul.addr %s282, 4
      %s287 = sadd.s32 %s285, %s286
      %s288 = smul.addr %s287, 8
      %s289 = scalar_lea.vmem %s0, %s288
      %p290 = scmp.lt.s32.totalorder %s19, 1
      %s291 = scalar_select %p290, %s19, 1
      %p292 = scmp.lt.s32.totalorder %s20, 1
      %s293 = scalar_select %p292, %s20, 1
      %s294 = smul.addr %s293, 2
      %s295 = smul.addr %s291, 4
      %s296 = sadd.s32 %s294, %s295
      %s297 = smul.addr %s296, 8
      %s298 = scalar_lea.vmem %s1, %s297
      %p299 = scmp.lt.s32.totalorder %s19, 1
      %s300 = scalar_select %p299, %s19, 1
      %p301 = scmp.lt.s32.totalorder %s20, 1
      %s302 = scalar_select %p301, %s20, 1
      %s303 = smul.addr %s302, 2
      %s304 = smul.addr %s300, 4
      %s305 = sadd.s32 %s303, %s304
      %s306 = smul.addr %s305, 8
      %s307 = scalar_lea.vmem %s2, %s306
      %p308 = scmp.lt.s32.totalorder %s19, 1
      %s309 = scalar_select %p308, %s19, 1
      %s310 = smul.addr %s309, 2
      %s311 = smul.addr %s310, 8
      %s312 = scalar_lea.vmem %s3, %s311
      %p313 = scmp.lt.s32.totalorder %s19, 1
      %s314 = scalar_select %p313, %s19, 1
      %p315 = scmp.lt.s32.totalorder %s20, 1
      %s316 = scalar_select %p315, %s20, 1
      %s317 = smul.addr %s316, 2
      %s318 = smul.addr %s314, 4
      %s319 = sadd.s32 %s317, %s318
      %s320 = smul.addr %s319, 8
      %s321 = scalar_lea.vmem %s4, %s320
      %v323 = vld [vmem:[%s289] sm:$0xff]
      %v324 = vld [vmem:[%s289 + $0x8] sm:$0xff]
      %v325 = vpack.c.bf16 %v324, %v323
      %v326 = vld [vmem:[%s298] sm:$0xff]
      %v327 = vld [vmem:[%s298 + $0x8] sm:$0xff]
      %v328 = vpack.c.bf16 %v327, %v326
      %v329 = vld [vmem:[%s307] sm:$0xff]
      %v330 = vld [vmem:[%s307 + $0x8] sm:$0xff]
      %v331 = vpack.c.bf16 %v330, %v329
      %vm332 = vcmask 31744
      %v334 = vsel %vm332, %v325, 0
      %v337 = vsel %vm332, %v328, 0
      %339 = vmatpush.bf16.xpose.msra.mxu0 0
      %340 = vmatpush.bf16.xpose.msra.mxu0 0
      %341 = vmatpush.bf16.xpose.msra.mxu0 0
      %342 = vmatpush.bf16.xpose.msra.mxu0 0
      %343 = vmatpush.bf16.xpose.msra.mxu0 0
      %344 = vmatpush.bf16.xpose.msra.mxu0 0
      %345 = vmatpush.bf16.xpose.msra.mxu0 0
      %346 = vmatpush.bf16.xpose.msra.mxu0 %v337
      %347 = vmatmul.bf16.gmra.mxu0 %v334
      %v348 = vpop.f32.mrf.mxu0
      %v349 = vadd.f32 0.0, %v348
      %v350 = vpop.f32.mrf.mxu0
      %v351 = vadd.f32 0.0, %v350
      %352 = vdwg.mxu0
      %v353 = vmul.f32 %v349, 0.5
      %v354 = vmul.f32 %v351, 0.5
      %v355 = vld [vmem:[%s312] sm:$0xff]
      %v356 = vld [vmem:[%s312 + $0x8] sm:$0xff]
      %vm357 = vcmp.gt.f32.partialorder %v355, 0.0
      %vm358 = vcmp.gt.f32.partialorder %v356, 0.0
      %v359 = vsel %vm357, %v353, -10000.0
      %v360 = vsel %vm358, %v354, -10000.0
      %vm361 = vcmask 130048
      %v362 = vsel %vm361, %v359, -inf
      %363 = vmax.xlane.f32.xlu0 %v362
      %v364 = vpop.xlane.xlu0 %363
      %v365 = vsel %vm361, %v360, -inf
      %366 = vmax.xlane.f32.xlu0 %v365
      %v367 = vpop.xlane.xlu0 %366
      %v368 = vsub.f32 %v359, %v364
      %v369 = vsub.f32 %v360, %v367
      %v370 = vmul.f32 %v368, 1.442695
      %v371 = vpow.pop %v370
      %v372 = vmul.f32 %v369, 1.442695
      %v373 = vpow.pop %v372
      %v374 = vsel %vm361, %v371, 0.0
      %375 = vadd.xlane.f32.xlu0 %v374
      %v376 = vpop.xlane.xlu0 %375
      %v377 = vsel %vm361, %v373, 0.0
      %378 = vadd.xlane.f32.xlu0 %v377
      %v379 = vpop.xlane.xlu0 %378
      %v380 = vrcp.pop %v376
      %v381 = vmul.f32 %v376, %v380
      %v382 = vsub.f32 1.0, %v381
      %v383 = vmul.f32 %v380, %v382
      %v384 = vadd.f32 %v380, %v383
      %vm385 = vweird.f32 %v376
      %vm386 = vweird.f32 %v380
      %vm387 = vmor %vm385, %vm386
      %v388 = vsel %vm387, %v380, %v384
      %v389 = vand.u32 2147483647, %v376
      %vm390 = vcmp.eq.f32.partialorder %v389, 8.507059e+37
      %v391 = vand.u32 %v376, 2147483648
      %v392 = vor.u32 1.1754944e-38, %v391
      %v393 = vsel %vm390, %v392, %v388
      %v394 = vmul.f32 %v371, %v393
      %v395 = vrcp.pop %v379
      %v396 = vmul.f32 %v379, %v395
      %v397 = vsub.f32 1.0, %v396
      %v398 = vmul.f32 %v395, %v397
      %v399 = vadd.f32 %v395, %v398
      %vm400 = vweird.f32 %v379
      %vm401 = vweird.f32 %v395
      %vm402 = vmor %vm400, %vm401
      %v403 = vsel %vm402, %v395, %v399
      %v404 = vand.u32 2147483647, %v379
      %vm405 = vcmp.eq.f32.partialorder %v404, 8.507059e+37
      %v406 = vand.u32 %v379, 2147483648
      %v407 = vor.u32 1.1754944e-38, %v406
      %v408 = vsel %vm405, %v407, %v403
      %v409 = vmul.f32 %v373, %v408
      %v410 = vpack.c.bf16 %v409, %v394
      %v412 = vsel %vm361, %v410, 0
      %414 = vmatpush.bf16.msra.mxu0 0
      %415 = vmatpush.bf16.msra.mxu0 0
      %416 = vmatpush.bf16.msra.mxu0 0
      %417 = vmatpush.bf16.msra.mxu0 0
      %418 = vmatpush.bf16.msra.mxu0 0
      %419 = vmatpush.bf16.msra.mxu0 0
      %420 = vmatpush.bf16.msra.mxu0 0
      %421 = vmatpush.bf16.msra.mxu0 %v331
      %422 = vmatmul.bf16.gmra.mxu0 %v412
      %v423 = vpop.f32.mrf.mxu0
      %v424 = vadd.f32 0.0, %v423
      %v425 = vpop.f32.mrf.mxu0
      %v426 = vadd.f32 0.0, %v425
      %427 = vdwg.mxu0
      %428 = vst.msk [vmem:[%s321] sm:$0xff] %vm332, %v424
      %429 = vst.msk [vmem:[%s321 + $0x8] sm:$0xff] %vm332, %v426
      %p430 = scmp.lt.s32.totalorder %s19, 1
      %s431 = scalar_select %p430, %s19, 1
      %p432 = scmp.lt.s32.totalorder %s20, 1
      %s433 = scalar_select %p432, %s20, 1
      %s434 = smul.addr %s433, 2
      %s435 = smul.addr %s431, 4
      %s436 = sadd.s32 %s434, %s435
      %s437 = smul.addr %s436, 8
      %s438 = scalar_lea.vmem %s4, %s437
      // Predicated region
      $region37: #{_lambda_.30} parent=35 // pred_check
        %p439 = pneg %p157
      $region38: #{_lambda_.30} parent=35 // pred_check_branch
        %441 = sbr.rel (%p439) target = $region40
      $region39: #{_lambda_.30} parent=35 // pred_region
        _
      $region40: #{_lambda_.30} parent=35 // pred_fallthru
        _
    $region36: #{_lambda_.30} parent=5 // pred_fallthru
      _
    %p442 = scmp.le.s32.totalorder 2, %s10
    // Predicated region
    $region41: #{_lambda_.30} parent=5 // pred_check
      %p443 = pneg %p442
    $region42: #{_lambda_.30} parent=5 // pred_check_branch
      %445 = sbr.rel (%p443) target = $region44
    $region43: #{_lambda_.30} parent=5 // pred_region
      %s446 = ssub.s32 %s10, 2
      // Predicated region
      $region45: #{_lambda_.30} parent=43 // pred_check
        %p447 = pneg %p163
      $region46: #{_lambda_.30} parent=43 // pred_check_branch
        %449 = sbr.rel (%p447) target = $region48
      $region47: #{_lambda_.30} parent=43 // pred_region
        %p450 = scmp.lt.s32.totalorder %s21, 1
        %s451 = scalar_select %p450, %s21, 1
        %p452 = scmp.lt.s32.totalorder %s22, 1
        %s453 = scalar_select %p452, %s22, 1
        %s454 = smul.addr %s453, 2
        %s455 = smul.addr %s451, 4
        %s456 = sadd.s32 %s454, %s455
        %s457 = smul.addr %s456, 8
        %s458 = scalar_lea.vmem %s4, %s457
      $region48: #{_lambda_.30} parent=43 // pred_fallthru
        _
    $region44: #{_lambda_.30} parent=5 // pred_fallthru
      _
  $region6: #{_lambda_.30} parent=0 // loop_footer
    %s14 = sadd.s32 1, %s10
  $region7: #{_lambda_.30} parent=0 // loop_footer_branch
    %9 = sbr.rel target = $region3
  $region8: #{_lambda_.30} parent=0 // loop_exit
    _

// kernel: _lambda_.27
$region0: #{_lambda_.27}
  #allocation0 [shape = 'u32[]', space=smem, size = 0x4, offset = 0x4, fixed_abs, tag = 'smem constant byte address 0x4 - core index']
  #allocation1 [shape = 'u32[72,128]{1,0:T(1,128)}', space=vmem, size = 0x9000, scoped, tag = 'internal scratch']
  %s0 = inlined_call_operand.vmem [shape: bf16[32,8], index: 0, kind: input, shape index: {}]
  %s1 = inlined_call_operand.vmem [shape: bf16[8,8], index: 1, kind: input, shape index: {}]
  %s2 = inlined_call_operand.vmem [shape: f32[1,8], index: 2, kind: input, shape index: {}]
  %s3 = inlined_call_operand.vmem [shape: f32[32,8], index: 3, kind: output, shape index: {}]
  %s4 = sld [smem:[#allocation0]]
  $region22: #{_lambda_.27} parent=0
    _
  %s6 = ssub.s32 1, %s4
  %s7 = scalar_select 0, %s6, %s4
  // Predicated region
  $region2: #{_lambda_.27} parent=0 // pred_check
    _
  $region3: #{_lambda_.27} parent=0 // pred_check_branch
    %9 = sbr.rel (0) target = $region5
  $region4: #{_lambda_.27} parent=0 // pred_region
    _
  $region5: #{_lambda_.27} parent=0 // pred_fallthru
    _
  // Predicated region
  $region6: #{_lambda_.27} parent=0 // pred_check
    _
  $region7: #{_lambda_.27} parent=0 // pred_check_branch
    %11 = sbr.rel (0) target = $region9
  $region8: #{_lambda_.27} parent=0 // pred_region
    _
  $region9: #{_lambda_.27} parent=0 // pred_fallthru
    _
  // Predicated region
  $region10: #{_lambda_.27} parent=0 // pred_check
    _
  $region11: #{_lambda_.27} parent=0 // pred_check_branch
    %13 = sbr.rel (0) target = $region13
  $region12: #{_lambda_.27} parent=0 // pred_region
    _
  $region13: #{_lambda_.27} parent=0 // pred_fallthru
    _
  %v15 = vld [vmem:[%s0] sm:$0xf]
  %v16 = vld [vmem:[%s0 + $0x4] sm:$0xf]
  %v17 = vld [vmem:[%s0 + $0x8] sm:$0xf]
  %v18 = vld [vmem:[%s0 + $0xc] sm:$0xf]
  %v19 = vld [vmem:[%s1] sm:$0xf]
  %v20 = vld [vmem:[%s2] sm:$0x1]
  %v22 = vperm.slane %v20, 0
  %v28 = vunpack.c.l.b16 %v15
  %v29 = vunpack.c.l.b16 %v16
  %v30 = vunpack.c.l.b16 %v17
  %v31 = vunpack.c.l.b16 %v18
  %v32 = vpack.c.b16 %v29, %v28
  %v33 = vpack.c.b16 %v31, %v30
  %vm34 = vcmask 64512
  %v36 = vsel %vm34, %v32, 0
  %v39 = vsel %vm34, %v33, 0
  %vm41 = vcmask 1043456
  %v43 = vsel %vm41, %v19, 0
  %45 = vmatpush.bf16.msra.mxu0 0
  %46 = vmatpush.bf16.msra.mxu0 0
  %47 = vmatpush.bf16.msra.mxu0 0
  %48 = vmatpush.bf16.msra.mxu0 0
  %49 = vmatpush.bf16.msra.mxu0 0
  %50 = vmatpush.bf16.msra.mxu0 0
  %51 = vmatpush.bf16.msra.mxu0 0
  %52 = vmatpush.bf16.msra.mxu0 %v43
  %53 = vmatmul.bf16.gmra.mxu0 %v36
  %v54 = vpop.f32.mrf.mxu0
  %v55 = vadd.f32 %v22, %v54
  %v56 = vpop.f32.mrf.mxu0
  %v57 = vadd.f32 %v22, %v56
  %58 = vmatmul.bf16.gmra.mxu0 %v39
  %v59 = vpop.f32.mrf.mxu0
  %v60 = vadd.f32 %v22, %v59
  %v61 = vpop.f32.mrf.mxu0
  %v62 = vadd.f32 %v22, %v61
  %63 = vdwg.mxu0
  %64 = vst.msk [vmem:[%s3] sm:$0xff] %vm34, %v55
  %65 = vst.msk [vmem:[%s3 + $0x8] sm:$0xff] %vm34, %v57
  %66 = vst.msk [vmem:[%s3 + $0x10] sm:$0xff] %vm34, %v60
  %67 = vst.msk [vmem:[%s3 + $0x18] sm:$0xff] %vm34, %v62
  // Predicated region
  $region14: #{_lambda_.27} parent=0 // pred_check
    _
  $region15: #{_lambda_.27} parent=0 // pred_check_branch
    %69 = sbr.rel (0) target = $region17
  $region16: #{_lambda_.27} parent=0 // pred_region
    _
  $region17: #{_lambda_.27} parent=0 // pred_fallthru
    _
  // Predicated region
  $region18: #{_lambda_.27} parent=0 // pred_check
    _
  $region19: #{_lambda_.27} parent=0 // pred_check_branch
    %71 = sbr.rel (0) target = $region21
  $region20: #{_lambda_.27} parent=0 // pred_region
    _
  $region21: #{_lambda_.27} parent=0 // pred_fallthru
    _

// kernel: _lambda_.32
$region0: #{_lambda_.32}
  #allocation0 [shape = 'u32[]', space=smem, size = 0x4, offset = 0x4, fixed_abs, tag = 'smem constant byte address 0x4 - core index']
  #allocation1 [shape = 'u32[72,128]{1,0:T(1,128)}', space=vmem, size = 0x9000, scoped, tag = 'internal scratch']
  %s0 = inlined_call_operand.vmem [shape: f32[32,8], index: 0, kind: input, shape index: {}]
  %s1 = inlined_call_operand.vmem [shape: f32[1,8], index: 1, kind: input, shape index: {}]
  %s2 = inlined_call_operand.vmem [shape: f32[1,8], index: 2, kind: input, shape index: {}]
  %s3 = inlined_call_operand.vmem [shape: f32[32,8], index: 3, kind: output, shape index: {}]
  %s4 = sld [smem:[#allocation0]]
  $region22: #{_lambda_.32} parent=0
    _
  %s6 = ssub.s32 1, %s4
  %s7 = scalar_select 0, %s6, %s4
  // Predicated region
  $region2: #{_lambda_.32} parent=0 // pred_check
    _
  $region3: #{_lambda_.32} parent=0 // pred_check_branch
    %9 = sbr.rel (0) target = $region5
  $region4: #{_lambda_.32} parent=0 // pred_region
    _
  $region5: #{_lambda_.32} parent=0 // pred_fallthru
    _
  // Predicated region
  $region6: #{_lambda_.32} parent=0 // pred_check
    _
  $region7: #{_lambda_.32} parent=0 // pred_check_branch
    %11 = sbr.rel (0) target = $region9
  $region8: #{_lambda_.32} parent=0 // pred_region
    _
  $region9: #{_lambda_.32} parent=0 // pred_fallthru
    _
  // Predicated region
  $region10: #{_lambda_.32} parent=0 // pred_check
    _
  $region11: #{_lambda_.32} parent=0 // pred_check_branch
    %13 = sbr.rel (0) target = $region13
  $region12: #{_lambda_.32} parent=0 // pred_region
    _
  $region13: #{_lambda_.32} parent=0 // pred_fallthru
    _
  %v14 = vld [vmem:[%s0] sm:$0xff]
  %v15 = vld [vmem:[%s0 + $0x8] sm:$0xff]
  %v16 = vld [vmem:[%s0 + $0x10] sm:$0xff]
  %v17 = vld [vmem:[%s0 + $0x18] sm:$0xff]
  %vm18 = vcmask 64512
  %v19 = vsel %vm18, %v14, 0.0
  %20 = vadd.xlane.f32.xlu0 %v19
  %v21 = vpop.xlane.xlu0 %20
  %v22 = vsel %vm18, %v15, 0.0
  %23 = vadd.xlane.f32.xlu0 %v22
  %v24 = vpop.xlane.xlu0 %23
  %v25 = vsel %vm18, %v16, 0.0
  %26 = vadd.xlane.f32.xlu0 %v25
  %v27 = vpop.xlane.xlu0 %26
  %v28 = vsel %vm18, %v17, 0.0
  %29 = vadd.xlane.f32.xlu0 %v28
  %v30 = vpop.xlane.xlu0 %29
  %v31 = vrcp.pop 8.0
  %v32 = vmul.f32 8.0, %v31
  %v33 = vsub.f32 1.0, %v32
  %v34 = vmul.f32 %v31, %v33
  %v35 = vadd.f32 %v31, %v34
  %vm36 = vweird.f32 %v31
  %v37 = vsel %vm36, %v31, %v35
  %v38 = vmul.f32 %v21, %v37
  %v39 = vmul.f32 %v24, %v37
  %v40 = vmul.f32 %v27, %v37
  %v41 = vmul.f32 %v30, %v37
  %v42 = vsub.f32 %v14, %v38
  %v43 = vsub.f32 %v15, %v39
  %v44 = vsub.f32 %v16, %v40
  %v45 = vsub.f32 %v17, %v41
  %v46 = vmul.f32 %v42, %v42
  %v47 = vmul.f32 %v43, %v43
  %v48 = vmul.f32 %v44, %v44
  %v49 = vmul.f32 %v45, %v45
  %v50 = vsel %vm18, %v46, 0.0
  %51 = vadd.xlane.f32.xlu0 %v50
  %v52 = vpop.xlane.xlu0 %51
  %v53 = vsel %vm18, %v47, 0.0
  %54 = vadd.xlane.f32.xlu0 %v53
  %v55 = vpop.xlane.xlu0 %54
  %v56 = vsel %vm18, %v48, 0.0
  %57 = vadd.xlane.f32.xlu0 %v56
  %v58 = vpop.xlane.xlu0 %57
  %v59 = vsel %vm18, %v49, 0.0
  %60 = vadd.xlane.f32.xlu0 %v59
  %v61 = vpop.xlane.xlu0 %60
  %v62 = vmul.f32 %v52, %v37
  %v63 = vmul.f32 %v55, %v37
  %v64 = vmul.f32 %v58, %v37
  %v65 = vmul.f32 %v61, %v37
  %v66 = vadd.f32 %v62, 1e-05
  %v67 = vadd.f32 %v63, 1e-05
  %v68 = vadd.f32 %v64, 1e-05
  %v69 = vadd.f32 %v65, 1e-05
  %v70 = vrsqrt.pop %v66
  %v71 = vmul.f32 %v70, %v66
  %v72 = vmul.f32 %v71, %v70
  %v73 = vmul.f32 0.5, %v72
  %v74 = vsub.f32 1.5, %v73
  %v75 = vmul.f32 %v70, %v74
  %vm76 = vweird.f32 %v66
  %vm77 = vweird.f32 %v70
  %vm78 = vmor %vm76, %vm77
  %v79 = vsel %vm78, %v70, %v75
  %v80 = vrsqrt.pop %v67
  %v81 = vmul.f32 %v80, %v67
  %v82 = vmul.f32 %v81, %v80
  %v83 = vmul.f32 0.5, %v82
  %v84 = vsub.f32 1.5, %v83
  %v85 = vmul.f32 %v80, %v84
  %vm86 = vweird.f32 %v67
  %vm87 = vweird.f32 %v80
  %vm88 = vmor %vm86, %vm87
  %v89 = vsel %vm88, %v80, %v85
  %v90 = vrsqrt.pop %v68
  %v91 = vmul.f32 %v90, %v68
  %v92 = vmul.f32 %v91, %v90
  %v93 = vmul.f32 0.5, %v92
  %v94 = vsub.f32 1.5, %v93
  %v95 = vmul.f32 %v90, %v94
  %vm96 = vweird.f32 %v68
  %vm97 = vweird.f32 %v90
  %vm98 = vmor %vm96, %vm97
  %v99 = vsel %vm98, %v90, %v95
  %v100 = vrsqrt.pop %v69
  %v101 = vmul.f32 %v100, %v69
  %v102 = vmul.f32 %v101, %v100
  %v103 = vmul.f32 0.5, %v102
  %v104 = vsub.f32 1.5, %v103
  %v105 = vmul.f32 %v100, %v104
  %vm106 = vweird.f32 %v69
  %vm107 = vweird.f32 %v100
  %vm108 = vmor %vm106, %vm107
  %v109 = vsel %vm108, %v100, %v105
  %v110 = vmul.f32 %v42, %v79
  %v111 = vmul.f32 %v43, %v89
  %v112 = vmul.f32 %v44, %v99
  %v113 = vmul.f32 %v45, %v109
  %v114 = vld [vmem:[%s1] sm:$0x1]
  %v116 = vperm.slane %v114, 0
  %v118 = vmul.f32 %v110, %v116
  %v119 = vmul.f32 %v111, %v116
  %v120 = vmul.f32 %v112, %v116
  %v121 = vmul.f32 %v113, %v116
  %v122 = vld [vmem:[%s2] sm:$0x1]
  %v124 = vperm.slane %v122, 0
  %v126 = vadd.f32 %v118, %v124
  %v127 = vadd.f32 %v119, %v124
  %v128 = vadd.f32 %v120, %v124
  %v129 = vadd.f32 %v121, %v124
  %130 = vst.msk [vmem:[%s3] sm:$0xff] %vm18, %v126
  %131 = vst.msk [vmem:[%s3 + $0x8] sm:$0xff] %vm18, %v127
  %132 = vst.msk [vmem:[%s3 + $0x10] sm:$0xff] %vm18, %v128
  %133 = vst.msk [vmem:[%s3 + $0x18] sm:$0xff] %vm18, %v129
  // Predicated region
  $region14: #{_lambda_.32} parent=0 // pred_check
    _
  $region15: #{_lambda_.32} parent=0 // pred_check_branch
    %135 = sbr.rel (0) target = $region17
  $region16: #{_lambda_.32} parent=0 // pred_region
    _
  $region17: #{_lambda_.32} parent=0 // pred_fallthru
    _
  // Predicated region
  $region18: #{_lambda_.32} parent=0 // pred_check
    _
  $region19: #{_lambda_.32} parent=0 // pred_check_branch
    %137 = sbr.rel (0) target = $region21
  $region20: #{_lambda_.32} parent=0 // pred_region
    _
  $region21: #{_lambda_.32} parent=0 // pred_fallthru
    _

// kernel: _lambda_.33
$region0: #{_lambda_.33}
  #allocation0 [shape = 'u32[]', space=smem, size = 0x4, offset = 0x4, fixed_abs, tag = 'smem constant byte address 0x4 - core index']
  #allocation1 [shape = 'u32[72,128]{1,0:T(1,128)}', space=vmem, size = 0x9000, scoped, tag = 'internal scratch']
  %s0 = inlined_call_operand.vmem [shape: bf16[32,24], index: 0, kind: input, shape index: {}]
  %s1 = inlined_call_operand.vmem [shape: bf16[24,8], index: 1, kind: input, shape index: {}]
  %s2 = inlined_call_operand.vmem [shape: f32[1,8], index: 2, kind: input, shape index: {}]
  %s3 = inlined_call_operand.vmem [shape: f32[32,8], index: 3, kind: output, shape index: {}]
  %s4 = sld [smem:[#allocation0]]
  $region22: #{_lambda_.33} parent=0
    _
  %s6 = ssub.s32 1, %s4
  %s7 = scalar_select 0, %s6, %s4
  // Predicated region
  $region2: #{_lambda_.33} parent=0 // pred_check
    _
  $region3: #{_lambda_.33} parent=0 // pred_check_branch
    %9 = sbr.rel (0) target = $region5
  $region4: #{_lambda_.33} parent=0 // pred_region
    _
  $region5: #{_lambda_.33} parent=0 // pred_fallthru
    _
  // Predicated region
  $region6: #{_lambda_.33} parent=0 // pred_check
    _
  $region7: #{_lambda_.33} parent=0 // pred_check_branch
    %11 = sbr.rel (0) target = $region9
  $region8: #{_lambda_.33} parent=0 // pred_region
    _
  $region9: #{_lambda_.33} parent=0 // pred_fallthru
    _
  // Predicated region
  $region10: #{_lambda_.33} parent=0 // pred_check
    _
  $region11: #{_lambda_.33} parent=0 // pred_check_branch
    %13 = sbr.rel (0) target = $region13
  $region12: #{_lambda_.33} parent=0 // pred_region
    _
  $region13: #{_lambda_.33} parent=0 // pred_fallthru
    _
  %v15 = vld [vmem:[%s0] sm:$0xf]
  %v16 = vld [vmem:[%s0 + $0x4] sm:$0xf]
  %v17 = vld [vmem:[%s0 + $0x8] sm:$0xf]
  %v18 = vld [vmem:[%s0 + $0xc] sm:$0xf]
  %v19 = vld [vmem:[%s1] sm:$0xf]
  %v20 = vld [vmem:[%s1 + $0x4] sm:$0xf]
  %v21 = vld [vmem:[%s1 + $0x8] sm:$0xf]
  %v22 = vld [vmem:[%s2] sm:$0x1]
  %v24 = vperm.slane %v22, 0
  %v30 = vunpack.c.l.b16 %v15
  %v31 = vunpack.c.l.b16 %v16
  %v32 = vunpack.c.l.b16 %v17
  %v33 = vunpack.c.l.b16 %v18
  %v34 = vpack.c.b16 %v31, %v30
  %v35 = vpack.c.b16 %v33, %v32
  %v39 = vunpack.c.l.b16 %v19
  %v40 = vunpack.c.l.b16 %v20
  %v41 = vunpack.c.l.b16 %v21
  %v42 = vpack.c.b16 %v40, %v39
  %v43 = vpack.c.b16 %v41, %v41
  %vm45 = vcmask 195584
  %v47 = vsel %vm45, %v34, 0
  %v50 = vsel %vm45, %v35, 0
  %vm52 = vcmask 1043456
  %v54 = vsel %vm52, %v43, 0
  %56 = vmatpush.bf16.msra.mxu0 0
  %57 = vmatpush.bf16.msra.mxu0 0
  %58 = vmatpush.bf16.msra.mxu0 0
  %59 = vmatpush.bf16.msra.mxu0 0
  %60 = vmatpush.bf16.msra.mxu0 0
  %61 = vmatpush.bf16.msra.mxu0 0
  %62 = vmatpush.bf16.msra.mxu0 %v54
  %63 = vmatpush.bf16.msra.mxu0 %v42
  %64 = vmatmul.bf16.gmra.mxu0 %v47
  %v65 = vpop.f32.mrf.mxu0
  %v66 = vadd.f32 %v24, %v65
  %v67 = vpop.f32.mrf.mxu0
  %v68 = vadd.f32 %v24, %v67
  %69 = vmatmul.bf16.gmra.mxu0 %v50
  %v70 = vpop.f32.mrf.mxu0
  %v71 = vadd.f32 %v24, %v70
  %v72 = vpop.f32.mrf.mxu0
  %v73 = vadd.f32 %v24, %v72
  %74 = vdwg.mxu0
  %v75 = vmax.f32 %v66, 0.0
  %v76 = vmax.f32 %v68, 0.0
  %v77 = vmax.f32 %v71, 0.0
  %v78 = vmax.f32 %v73, 0.0
  %vm79 = vcmask 64512
  %80 = vst.msk [vmem:[%s3] sm:$0xff] %vm79, %v75
  %81 = vst.msk [vmem:[%s3 + $0x8] sm:$0xff] %vm79, %v76
  %82 = vst.msk [vmem:[%s3 + $0x10] sm:$0xff] %vm79, %v77
  %83 = vst.msk [vmem:[%s3 + $0x18] sm:$0xff] %vm79, %v78
  // Predicated region
  $region14: #{_lambda_.33} parent=0 // pred_check
    _
  $region15: #{_lambda_.33} parent=0 // pred_check_branch
    %85 = sbr.rel (0) target = $region17
  $region16: #{_lambda_.33} parent=0 // pred_region
    _
  $region17: #{_lambda_.33} parent=0 // pred_fallthru
    _
  // Predicated region
  $region18: #{_lambda_.33} parent=0 // pred_check
    _
  $region19: #{_lambda_.33} parent=0 // pred_check_branch
    %87 = sbr.rel (0) target = $region21
  $region20: #{_lambda_.33} parent=0 // pred_region
    _
  $region21: #{_lambda_.33} parent=0 // pred_fallthru
    _

// kernel: _lambda_.34
$region0: #{_lambda_.34}
  #allocation0 [shape = 'u32[]', space=smem, size = 0x4, offset = 0x4, fixed_abs, tag = 'smem constant byte address 0x4 - core index']
  #allocation1 [shape = 'u32[72,128]{1,0:T(1,128)}', space=vmem, size = 0x9000, scoped, tag = 'internal scratch']
  %s0 = inlined_call_operand.vmem [shape: bf16[32,24], index: 0, kind: input, shape index: {}]
  %s1 = inlined_call_operand.vmem [shape: bf16[24,8], index: 1, kind: input, shape index: {}]
  %s2 = inlined_call_operand.vmem [shape: f32[1,8], index: 2, kind: input, shape index: {}]
  %s3 = inlined_call_operand.vmem [shape: f32[32,8], index: 3, kind: output, shape index: {}]
  %s4 = sld [smem:[#allocation0]]
  $region22: #{_lambda_.34} parent=0
    _
  %s6 = ssub.s32 1, %s4
  %s7 = scalar_select 0, %s6, %s4
  // Predicated region
  $region2: #{_lambda_.34} parent=0 // pred_check
    _
  $region3: #{_lambda_.34} parent=0 // pred_check_branch
    %9 = sbr.rel (0) target = $region5
  $region4: #{_lambda_.34} parent=0 // pred_region
    _
  $region5: #{_lambda_.34} parent=0 // pred_fallthru
    _
  // Predicated region
  $region6: #{_lambda_.34} parent=0 // pred_check
    _
  $region7: #{_lambda_.34} parent=0 // pred_check_branch
    %11 = sbr.rel (0) target = $region9
  $region8: #{_lambda_.34} parent=0 // pred_region
    _
  $region9: #{_lambda_.34} parent=0 // pred_fallthru
    _
  // Predicated region
  $region10: #{_lambda_.34} parent=0 // pred_check
    _
  $region11: #{_lambda_.34} parent=0 // pred_check_branch
    %13 = sbr.rel (0) target = $region13
  $region12: #{_lambda_.34} parent=0 // pred_region
    _
  $region13: #{_lambda_.34} parent=0 // pred_fallthru
    _
  %v15 = vld [vmem:[%s0] sm:$0xf]
  %v16 = vld [vmem:[%s0 + $0x4] sm:$0xf]
  %v17 = vld [vmem:[%s0 + $0x8] sm:$0xf]
  %v18 = vld [vmem:[%s0 + $0xc] sm:$0xf]
  %v19 = vld [vmem:[%s1] sm:$0xf]
  %v20 = vld [vmem:[%s1 + $0x4] sm:$0xf]
  %v21 = vld [vmem:[%s1 + $0x8] sm:$0xf]
  %v22 = vld [vmem:[%s2] sm:$0x1]
  %v24 = vperm.slane %v22, 0
  %v30 = vunpack.c.l.b16 %v15
  %v31 = vunpack.c.l.b16 %v16
  %v32 = vunpack.c.l.b16 %v17
  %v33 = vunpack.c.l.b16 %v18
  %v34 = vpack.c.b16 %v31, %v30
  %v35 = vpack.c.b16 %v33, %v32
  %v39 = vunpack.c.l.b16 %v19
  %v40 = vunpack.c.l.b16 %v20
  %v41 = vunpack.c.l.b16 %v21
  %v42 = vpack.c.b16 %v40, %v39
  %v43 = vpack.c.b16 %v41, %v41
  %vm45 = vcmask 195584
  %v47 = vsel %vm45, %v34, 0
  %v50 = vsel %vm45, %v35, 0
  %vm52 = vcmask 1043456
  %v54 = vsel %vm52, %v43, 0
  %56 = vmatpush.bf16.msra.mxu0 0
  %57 = vmatpush.bf16.msra.mxu0 0
  %58 = vmatpush.bf16.msra.mxu0 0
  %59 = vmatpush.bf16.msra.mxu0 0
  %60 = vmatpush.bf16.msra.mxu0 0
  %61 = vmatpush.bf16.msra.mxu0 0
  %62 = vmatpush.bf16.msra.mxu0 %v54
  %63 = vmatpush.bf16.msra.mxu0 %v42
  %64 = vmatmul.bf16.gmra.mxu0 %v47
  %v65 = vpop.f32.mrf.mxu0
  %v66 = vadd.f32 %v24, %v65
  %v67 = vpop.f32.mrf.mxu0
  %v68 = vadd.f32 %v24, %v67
  %69 = vmatmul.bf16.gmra.mxu0 %v50
  %v70 = vpop.f32.mrf.mxu0
  %v71 = vadd.f32 %v24, %v70
  %v72 = vpop.f32.mrf.mxu0
  %v73 = vadd.f32 %v24, %v72
  %74 = vdwg.mxu0
  %vm75 = vcmask 64512
  %76 = vst.msk [vmem:[%s3] sm:$0xff] %vm75, %v66
  %77 = vst.msk [vmem:[%s3 + $0x8] sm:$0xff] %vm75, %v68
  %78 = vst.msk [vmem:[%s3 + $0x10] sm:$0xff] %vm75, %v71
  %79 = vst.msk [vmem:[%s3 + $0x18] sm:$0xff] %vm75, %v73
  // Predicated region
  $region14: #{_lambda_.34} parent=0 // pred_check
    _
  $region15: #{_lambda_.34} parent=0 // pred_check_branch
    %81 = sbr.rel (0) target = $region17
  $region16: #{_lambda_.34} parent=0 // pred_region
    _
  $region17: #{_lambda_.34} parent=0 // pred_fallthru
    _
  // Predicated region
  $region18: #{_lambda_.34} parent=0 // pred_check
    _
  $region19: #{_lambda_.34} parent=0 // pred_check_branch
    %83 = sbr.rel (0) target = $region21
  $region20: #{_lambda_.34} parent=0 // pred_region
    _
  $region21: #{_lambda_.34} parent=0 // pred_fallthru
    _

// kernel: _lambda_.45
$region0: #{_lambda_.45}
  #allocation0 [shape = 'u32[]', space=smem, size = 0x4, offset = 0x4, fixed_abs, tag = 'smem constant byte address 0x4 - core index']
  #allocation1 [shape = 'u32[72,128]{1,0:T(1,128)}', space=vmem, size = 0x9000, scoped, tag = 'internal scratch']
  %s0 = inlined_call_operand.vmem [shape: bf16[32,8], index: 0, kind: input, shape index: {}]
  %s1 = inlined_call_operand.vmem [shape: bf16[8,32], index: 1, kind: input, shape index: {}]
  %s2 = inlined_call_operand.vmem [shape: f32[1,32], index: 2, kind: input, shape index: {}]
  %s3 = inlined_call_operand.vmem [shape: f32[32,32], index: 3, kind: output, shape index: {}]
  %s4 = sld [smem:[#allocation0]]
  $region22: #{_lambda_.45} parent=0
    _
  %s6 = ssub.s32 1, %s4
  %s7 = scalar_select 0, %s6, %s4
  // Predicated region
  $region2: #{_lambda_.45} parent=0 // pred_check
    _
  $region3: #{_lambda_.45} parent=0 // pred_check_branch
    %9 = sbr.rel (0) target = $region5
  $region4: #{_lambda_.45} parent=0 // pred_region
    _
  $region5: #{_lambda_.45} parent=0 // pred_fallthru
    _
  // Predicated region
  $region6: #{_lambda_.45} parent=0 // pred_check
    _
  $region7: #{_lambda_.45} parent=0 // pred_check_branch
    %11 = sbr.rel (0) target = $region9
  $region8: #{_lambda_.45} parent=0 // pred_region
    _
  $region9: #{_lambda_.45} parent=0 // pred_fallthru
    _
  // Predicated region
  $region10: #{_lambda_.45} parent=0 // pred_check
    _
  $region11: #{_lambda_.45} parent=0 // pred_check_branch
    %13 = sbr.rel (0) target = $region13
  $region12: #{_lambda_.45} parent=0 // pred_region
    _
  $region13: #{_lambda_.45} parent=0 // pred_fallthru
    _
  %v15 = vld [vmem:[%s0] sm:$0xf]
  %v16 = vld [vmem:[%s0 + $0x4] sm:$0xf]
  %v17 = vld [vmem:[%s0 + $0x8] sm:$0xf]
  %v18 = vld [vmem:[%s0 + $0xc] sm:$0xf]
  %v19 = vld [vmem:[%s1] sm:$0xf]
  %v20 = vld [vmem:[%s2] sm:$0x1]
  %v22 = vperm.slane %v20, 0
  %v28 = vunpack.c.l.b16 %v15
  %v29 = vunpack.c.l.b16 %v16
  %v30 = vunpack.c.l.b16 %v17
  %v31 = vunpack.c.l.b16 %v18
  %v32 = vpack.c.b16 %v29, %v28
  %v33 = vpack.c.b16 %v31, %v30
  %vm34 = vcmask 64512
  %v36 = vsel %vm34, %v32, 0
  %v39 = vsel %vm34, %v33, 0
  %vm41 = vcmask 1043456
  %v43 = vsel %vm41, %v19, 0
  %45 = vmatpush.bf16.msra.mxu0 0
  %46 = vmatpush.bf16.msra.mxu0 0
  %47 = vmatpush.bf16.msra.mxu0 0
  %48 = vmatpush.bf16.msra.mxu0 0
  %49 = vmatpush.bf16.msra.mxu0 0
  %50 = vmatpush.bf16.msra.mxu0 0
  %51 = vmatpush.bf16.msra.mxu0 0
  %52 = vmatpush.bf16.msra.mxu0 %v43
  %53 = vmatmul.bf16.gmra.mxu0 %v36
  %v54 = vpop.f32.mrf.mxu0
  %v55 = vadd.f32 %v22, %v54
  %v56 = vpop.f32.mrf.mxu0
  %v57 = vadd.f32 %v22, %v56
  %58 = vmatmul.bf16.gmra.mxu0 %v39
  %v59 = vpop.f32.mrf.mxu0
  %v60 = vadd.f32 %v22, %v59
  %v61 = vpop.f32.mrf.mxu0
  %v62 = vadd.f32 %v22, %v61
  %63 = vdwg.mxu0
  %vm64 = vcmask 261120
  %65 = vst.msk [vmem:[%s3] sm:$0xff] %vm64, %v55
  %66 = vst.msk [vmem:[%s3 + $0x8] sm:$0xff] %vm64, %v57
  %67 = vst.msk [vmem:[%s3 + $0x10] sm:$0xff] %vm64, %v60
  %68 = vst.msk [vmem:[%s3 + $0x18] sm:$0xff] %vm64, %v62
  // Predicated region
  $region14: #{_lambda_.45} parent=0 // pred_check
    _
  $region15: #{_lambda_.45} parent=0 // pred_check_branch
    %70 = sbr.rel (0) target = $region17
  $region16: #{_lambda_.45} parent=0 // pred_region
    _
  $region17: #{_lambda_.45} parent=0 // pred_fallthru
    _
  // Predicated region
  $region18: #{_lambda_.45} parent=0 // pred_check
    _
  $region19: #{_lambda_.45} parent=0 // pred_check_branch
    %72 = sbr.rel (0) target = $region21
  $region20: #{_lambda_.45} parent=0 // pred_region
    _
  $region21: #{_lambda_.45} parent=0 // pred_fallthru
    _

// kernel: _lambda_.46
$region0: #{_lambda_.46}
  #allocation0 [shape = 'u32[]', space=smem, size = 0x4, offset = 0x4, fixed_abs, tag = 'smem constant byte address 0x4 - core index']
  #allocation1 [shape = 'u32[72,128]{1,0:T(1,128)}', space=vmem, size = 0x9000, scoped, tag = 'internal scratch']
  %s0 = inlined_call_operand.vmem [shape: bf16[32,160], index: 0, kind: input, shape index: {}]
  %s1 = inlined_call_operand.vmem [shape: bf16[160,64], index: 1, kind: input, shape index: {}]
  %s2 = inlined_call_operand.vmem [shape: f32[1,64], index: 2, kind: input, shape index: {}]
  %s3 = inlined_call_operand.vmem [shape: f32[32,32], index: 3, kind: output, shape index: {}]
  %s4 = sld [smem:[#allocation0]]
  $region22: #{_lambda_.46} parent=0
    _
  %s6 = ssub.s32 1, %s4
  %s7 = scalar_select 0, %s6, %s4
  // Predicated region
  $region2: #{_lambda_.46} parent=0 // pred_check
    _
  $region3: #{_lambda_.46} parent=0 // pred_check_branch
    %9 = sbr.rel (0) target = $region5
  $region4: #{_lambda_.46} parent=0 // pred_region
    _
  $region5: #{_lambda_.46} parent=0 // pred_fallthru
    _
  // Predicated region
  $region6: #{_lambda_.46} parent=0 // pred_check
    _
  $region7: #{_lambda_.46} parent=0 // pred_check_branch
    %11 = sbr.rel (0) target = $region9
  $region8: #{_lambda_.46} parent=0 // pred_region
    _
  $region9: #{_lambda_.46} parent=0 // pred_fallthru
    _
  // Predicated region
  $region10: #{_lambda_.46} parent=0 // pred_check
    _
  $region11: #{_lambda_.46} parent=0 // pred_check_branch
    %13 = sbr.rel (0) target = $region13
  $region12: #{_lambda_.46} parent=0 // pred_region
    _
  $region13: #{_lambda_.46} parent=0 // pred_fallthru
    _
  %v15 = vld [vmem:[%s0] sm:$0xff]
  %v16 = vld [vmem:[%s0 + $0x8] sm:$0xff]
  %v17 = vld [vmem:[%s0 + $0x10] sm:$0xff]
  %v18 = vld [vmem:[%s0 + $0x18] sm:$0xff]
  %v19 = vld [vmem:[%s1] sm:$0xf]
  %v20 = vld [vmem:[%s1 + $0x4] sm:$0xf]
  %v21 = vld [vmem:[%s1 + $0x8] sm:$0xf]
  %v22 = vld [vmem:[%s1 + $0xc] sm:$0xf]
  %v23 = vld [vmem:[%s1 + $0x10] sm:$0xf]
  %v24 = vld [vmem:[%s1 + $0x14] sm:$0xf]
  %v25 = vld [vmem:[%s1 + $0x18] sm:$0xf]
  %v26 = vld [vmem:[%s1 + $0x1c] sm:$0xf]
  %v27 = vld [vmem:[%s1 + $0x20] sm:$0xf]
  %v28 = vld [vmem:[%s1 + $0x24] sm:$0xf]
  %v29 = vld [vmem:[%s1 + $0x28] sm:$0xf]
  %v30 = vld [vmem:[%s1 + $0x2c] sm:$0xf]
  %v31 = vld [vmem:[%s1 + $0x30] sm:$0xf]
  %v32 = vld [vmem:[%s1 + $0x34] sm:$0xf]
  %v33 = vld [vmem:[%s1 + $0x38] sm:$0xf]
  %v34 = vld [vmem:[%s1 + $0x3c] sm:$0xf]
  %v35 = vld [vmem:[%s1 + $0x40] sm:$0xf]
  %v36 = vld [vmem:[%s1 + $0x44] sm:$0xf]
  %v37 = vld [vmem:[%s1 + $0x48] sm:$0xf]
  %v38 = vld [vmem:[%s1 + $0x4c] sm:$0xf]
  %v39 = vld [vmem:[%s2] sm:$0x1]
  %v41 = vperm.slane %v39, 0
  %v47 = vunpack.c.l.b16 %v15
  %v48 = vunpack.c.h.b16 %v15
  %v49 = vunpack.c.l.b16 %v16
  %v50 = vunpack.c.h.b16 %v16
  %v51 = vunpack.c.l.b16 %v17
  %v52 = vunpack.c.h.b16 %v17
  %v53 = vunpack.c.l.b16 %v18
  %v54 = vunpack.c.h.b16 %v18
  %v55 = vpack.c.b16 %v49, %v47
  %v56 = vpack.c.b16 %v50, %v48
  %v57 = vpack.c.b16 %v53, %v51
  %v58 = vpack.c.b16 %v54, %v52
  %v81 = vunpack.c.l.b16 %v19
  %v82 = vunpack.c.l.b16 %v20
  %v83 = vunpack.c.l.b16 %v21
  %v84 = vunpack.c.l.b16 %v22
  %v85 = vunpack.c.l.b16 %v23
  %v86 = vunpack.c.l.b16 %v24
  %v87 = vunpack.c.l.b16 %v25
  %v88 = vunpack.c.l.b16 %v26
  %v89 = vunpack.c.l.b16 %v27
  %v90 = vunpack.c.l.b16 %v28
  %v91 = vunpack.c.l.b16 %v29
  %v92 = vunpack.c.l.b16 %v30
  %v93 = vunpack.c.l.b16 %v31
  %v94 = vunpack.c.l.b16 %v32
  %v95 = vunpack.c.l.b16 %v33
  %v96 = vunpack.c.l.b16 %v34
  %v97 = vunpack.c.l.b16 %v35
  %v98 = vunpack.c.l.b16 %v36
  %v99 = vunpack.c.l.b16 %v37
  %v100 = vunpack.c.l.b16 %v38
  %v101 = vpack.c.b16 %v82, %v81
  %v102 = vpack.c.b16 %v84, %v83
  %v103 = vpack.c.b16 %v86, %v85
  %v104 = vpack.c.b16 %v88, %v87
  %v105 = vpack.c.b16 %v90, %v89
  %v106 = vpack.c.b16 %v92, %v91
  %v107 = vpack.c.b16 %v94, %v93
  %v108 = vpack.c.b16 %v96, %v95
  %v109 = vpack.c.b16 %v98, %v97
  %v110 = vpack.c.b16 %v100, %v99
  %vm121 = vcmask 261120
  %v123 = vsel %vm121, %v56, 0
  %v126 = vsel %vm121, %v58, 0
  %128 = vmatpush.bf16.msra.mxu0 %v108
  %129 = vmatpush.bf16.msra.mxu0 %v107
  %130 = vmatpush.bf16.msra.mxu0 %v106
  %131 = vmatpush.bf16.msra.mxu0 %v105
  %132 = vmatpush.bf16.msra.mxu0 %v104
  %133 = vmatpush.bf16.msra.mxu0 %v103
  %134 = vmatpush.bf16.msra.mxu0 %v102
  %135 = vmatpush.bf16.msra.mxu0 %v101
  %136 = vmatmul.bf16.gmra.mxu0 %v55
  %v137 = vpop.f32.mrf.mxu0
  %v138 = vadd.f32 %v41, %v137
  %v139 = vpop.f32.mrf.mxu0
  %v140 = vadd.f32 %v41, %v139
  %141 = vmatmul.bf16.gmra.mxu0 %v57
  %v142 = vpop.f32.mrf.mxu0
  %v143 = vadd.f32 %v41, %v142
  %v144 = vpop.f32.mrf.mxu0
  %v145 = vadd.f32 %v41, %v144
  %146 = vdwg.mxu0
  %147 = vmatpush.bf16.msra.mxu0 0
  %148 = vmatpush.bf16.msra.mxu0 0
  %149 = vmatpush.bf16.msra.mxu0 0
  %150 = vmatpush.bf16.msra.mxu0 0
  %151 = vmatpush.bf16.msra.mxu0 0
  %152 = vmatpush.bf16.msra.mxu0 0
  %153 = vmatpush.bf16.msra.mxu0 %v110
  %154 = vmatpush.bf16.msra.mxu0 %v109
  %155 = vmatmul.bf16.gmra.mxu0 %v123
  %v156 = vpop.f32.mrf.mxu0
  %v157 = vadd.f32 %v138, %v156
  %v158 = vpop.f32.mrf.mxu0
  %v159 = vadd.f32 %v140, %v158
  %160 = vmatmul.bf16.gmra.mxu0 %v126
  %v161 = vpop.f32.mrf.mxu0
  %v162 = vadd.f32 %v143, %v161
  %v163 = vpop.f32.mrf.mxu0
  %v164 = vadd.f32 %v145, %v163
  %165 = vdwg.mxu0
  %v166 = vtanh.pop %v157
  %v167 = vtanh.pop %v159
  %v168 = vtanh.pop %v162
  %v169 = vtanh.pop %v164
  %v170 = vxor.u32 %v157, 2147483648
  %v171 = vxor.u32 %v159, 2147483648
  %v172 = vxor.u32 %v162, 2147483648
  %v173 = vxor.u32 %v164, 2147483648
  %v174 = vmul.f32 %v170, 1.442695
  %v175 = vpow.pop %v174
  %v176 = vmul.f32 %v171, 1.442695
  %v177 = vpow.pop %v176
  %v178 = vmul.f32 %v172, 1.442695
  %v179 = vpow.pop %v178
  %v180 = vmul.f32 %v173, 1.442695
  %v181 = vpow.pop %v180
  %v182 = vadd.f32 %v175, 1.0
  %v183 = vadd.f32 %v177, 1.0
  %v184 = vadd.f32 %v179, 1.0
  %v185 = vadd.f32 %v181, 1.0
  %v186 = vrcp.pop %v182
  %v187 = vmul.f32 %v182, %v186
  %v188 = vsub.f32 1.0, %v187
  %v189 = vmul.f32 %v186, %v188
  %v190 = vadd.f32 %v186, %v189
  %vm191 = vweird.f32 %v182
  %vm192 = vweird.f32 %v186
  %vm193 = vmor %vm191, %vm192
  %v194 = vsel %vm193, %v186, %v190
  %v195 = vand.u32 2147483647, %v182
  %vm196 = vcmp.eq.f32.partialorder %v195, 8.507059e+37
  %v197 = vand.u32 %v182, 2147483648
  %v198 = vor.u32 1.1754944e-38, %v197
  %v199 = vsel %vm196, %v198, %v194
  %v200 = vmul.f32 1.0, %v199
  %v201 = vrcp.pop %v183
  %v202 = vmul.f32 %v183, %v201
  %v203 = vsub.f32 1.0, %v202
  %v204 = vmul.f32 %v201, %v203
  %v205 = vadd.f32 %v201, %v204
  %vm206 = vweird.f32 %v183
  %vm207 = vweird.f32 %v201
  %vm208 = vmor %vm206, %vm207
  %v209 = vsel %vm208, %v201, %v205
  %v210 = vand.u32 2147483647, %v183
  %vm211 = vcmp.eq.f32.partialorder %v210, 8.507059e+37
  %v212 = vand.u32 %v183, 2147483648
  %v213 = vor.u32 1.1754944e-38, %v212
  %v214 = vsel %vm211, %v213, %v209
  %v215 = vmul.f32 1.0, %v214
  %v216 = vrcp.pop %v184
  %v217 = vmul.f32 %v184, %v216
  %v218 = vsub.f32 1.0, %v217
  %v219 = vmul.f32 %v216, %v218
  %v220 = vadd.f32 %v216, %v219
  %vm221 = vweird.f32 %v184
  %vm222 = vweird.f32 %v216
  %vm223 = vmor %vm221, %vm222
  %v224 = vsel %vm223, %v216, %v220
  %v225 = vand.u32 2147483647, %v184
  %vm226 = vcmp.eq.f32.partialorder %v225, 8.507059e+37
  %v227 = vand.u32 %v184, 2147483648
  %v228 = vor.u32 1.1754944e-38, %v227
  %v229 = vsel %vm226, %v228, %v224
  %v230 = vmul.f32 1.0, %v229
  %v231 = vrcp.pop %v185
  %v232 = vmul.f32 %v185, %v231
  %v233 = vsub.f32 1.0, %v232
  %v234 = vmul.f32 %v231, %v233
  %v235 = vadd.f32 %v231, %v234
  %vm236 = vweird.f32 %v185
  %vm237 = vweird.f32 %v231
  %vm238 = vmor %vm236, %vm237
  %v239 = vsel %vm238, %v231, %v235
  %v240 = vand.u32 2147483647, %v185
  %vm241 = vcmp.eq.f32.partialorder %v240, 8.507059e+37
  %v242 = vand.u32 %v185, 2147483648
  %v243 = vor.u32 1.1754944e-38, %v242
  %v244 = vsel %vm241, %v243, %v239
  %v245 = vmul.f32 1.0, %v244
  %250 = vrot.lane.b32.xlu0 %v200, 96
  %v251 = vpop.permute.xlu0 %250
  %252 = vrot.lane.b32.xlu0 %v215, 96
  %v253 = vpop.permute.xlu0 %252
  %254 = vrot.lane.b32.xlu0 %v230, 96
  %v255 = vpop.permute.xlu0 %254
  %256 = vrot.lane.b32.xlu0 %v245, 96
  %v257 = vpop.permute.xlu0 %256
  %v262 = vmul.f32 %v166, %v251
  %v263 = vmul.f32 %v167, %v253
  %v264 = vmul.f32 %v168, %v255
  %v265 = vmul.f32 %v169, %v257
  %266 = vst.msk [vmem:[%s3] sm:$0xff] %vm121, %v262
  %267 = vst.msk [vmem:[%s3 + $0x8] sm:$0xff] %vm121, %v263
  %268 = vst.msk [vmem:[%s3 + $0x10] sm:$0xff] %vm121, %v264
  %269 = vst.msk [vmem:[%s3 + $0x18] sm:$0xff] %vm121, %v265
  // Predicated region
  $region14: #{_lambda_.46} parent=0 // pred_check
    _
  $region15: #{_lambda_.46} parent=0 // pred_check_branch
    %271 = sbr.rel (0) target = $region17
  $region16: #{_lambda_.46} parent=0 // pred_region
    _
  $region17: #{_lambda_.46} parent=0 // pred_fallthru
    _
  // Predicated region
  $region18: #{_lambda_.46} parent=0 // pred_check
    _
  $region19: #{_lambda_.46} parent=0 // pred_check_branch
    %273 = sbr.rel (0) target = $region21
  $region20: #{_lambda_.46} parent=0 // pred_region
    _
  $region21: #{_lambda_.46} parent=0 // pred_fallthru
    _

// kernel: _lambda_.47
$region0: #{_lambda_.47}
  #allocation0 [shape = 'u32[]', space=smem, size = 0x4, offset = 0x4, fixed_abs, tag = 'smem constant byte address 0x4 - core index']
  #allocation1 [shape = 'u32[72,128]{1,0:T(1,128)}', space=vmem, size = 0x9000, scoped, tag = 'internal scratch']
  %s0 = inlined_call_operand.vmem [shape: bf16[32,32], index: 0, kind: input, shape index: {}]
  %s1 = inlined_call_operand.vmem [shape: bf16[32,64], index: 1, kind: input, shape index: {}]
  %s2 = inlined_call_operand.vmem [shape: f32[1,64], index: 2, kind: input, shape index: {}]
  %s3 = inlined_call_operand.vmem [shape: f32[32,64], index: 3, kind: output, shape index: {}]
  %s4 = sld [smem:[#allocation0]]
  $region22: #{_lambda_.47} parent=0
    _
  %s6 = ssub.s32 1, %s4
  %s7 = scalar_select 0, %s6, %s4
  // Predicated region
  $region2: #{_lambda_.47} parent=0 // pred_check
    _
  $region3: #{_lambda_.47} parent=0 // pred_check_branch
    %9 = sbr.rel (0) target = $region5
  $region4: #{_lambda_.47} parent=0 // pred_region
    _
  $region5: #{_lambda_.47} parent=0 // pred_fallthru
    _
  // Predicated region
  $region6: #{_lambda_.47} parent=0 // pred_check
    _
  $region7: #{_lambda_.47} parent=0 // pred_check_branch
    %11 = sbr.rel (0) target = $region9
  $region8: #{_lambda_.47} parent=0 // pred_region
    _
  $region9: #{_lambda_.47} parent=0 // pred_fallthru
    _
  // Predicated region
  $region10: #{_lambda_.47} parent=0 // pred_check
    _
  $region11: #{_lambda_.47} parent=0 // pred_check_branch
    %13 = sbr.rel (0) target = $region13
  $region12: #{_lambda_.47} parent=0 // pred_region
    _
  $region13: #{_lambda_.47} parent=0 // pred_fallthru
    _
  %v15 = vld [vmem:[%s0] sm:$0xf]
  %v16 = vld [vmem:[%s0 + $0x4] sm:$0xf]
  %v17 = vld [vmem:[%s0 + $0x8] sm:$0xf]
  %v18 = vld [vmem:[%s0 + $0xc] sm:$0xf]
  %v19 = vld [vmem:[%s1] sm:$0xf]
  %v20 = vld [vmem:[%s1 + $0x4] sm:$0xf]
  %v21 = vld [vmem:[%s1 + $0x8] sm:$0xf]
  %v22 = vld [vmem:[%s1 + $0xc] sm:$0xf]
  %v23 = vld [vmem:[%s2] sm:$0x1]
  %v25 = vperm.slane %v23, 0
  %v31 = vunpack.c.l.b16 %v15
  %v32 = vunpack.c.l.b16 %v16
  %v33 = vunpack.c.l.b16 %v17
  %v34 = vunpack.c.l.b16 %v18
  %v35 = vpack.c.b16 %v32, %v31
  %v36 = vpack.c.b16 %v34, %v33
  %v41 = vunpack.c.l.b16 %v19
  %v42 = vunpack.c.l.b16 %v20
  %v43 = vunpack.c.l.b16 %v21
  %v44 = vunpack.c.l.b16 %v22
  %v45 = vpack.c.b16 %v42, %v41
  %v46 = vpack.c.b16 %v44, %v43
  %vm49 = vcmask 261120
  %v51 = vsel %vm49, %v35, 0
  %v54 = vsel %vm49, %v36, 0
  %56 = vmatpush.bf16.msra.mxu0 0
  %57 = vmatpush.bf16.msra.mxu0 0
  %58 = vmatpush.bf16.msra.mxu0 0
  %59 = vmatpush.bf16.msra.mxu0 0
  %60 = vmatpush.bf16.msra.mxu0 0
  %61 = vmatpush.bf16.msra.mxu0 0
  %62 = vmatpush.bf16.msra.mxu0 %v46
  %63 = vmatpush.bf16.msra.mxu0 %v45
  %64 = vmatmul.bf16.gmra.mxu0 %v51
  %v65 = vpop.f32.mrf.mxu0
  %v66 = vadd.f32 %v25, %v65
  %v67 = vpop.f32.mrf.mxu0
  %v68 = vadd.f32 %v25, %v67
  %69 = vmatmul.bf16.gmra.mxu0 %v54
  %v70 = vpop.f32.mrf.mxu0
  %v71 = vadd.f32 %v25, %v70
  %v72 = vpop.f32.mrf.mxu0
  %v73 = vadd.f32 %v25, %v72
  %74 = vdwg.mxu0
  %vm75 = vcmask 523264
  %76 = vst.msk [vmem:[%s3] sm:$0xff] %vm75, %v66
  %77 = vst.msk [vmem:[%s3 + $0x8] sm:$0xff] %vm75, %v68
  %78 = vst.msk [vmem:[%s3 + $0x10] sm:$0xff] %vm75, %v71
  %79 = vst.msk [vmem:[%s3 + $0x18] sm:$0xff] %vm75, %v73
  // Predicated region
  $region14: #{_lambda_.47} parent=0 // pred_check
    _
  $region15: #{_lambda_.47} parent=0 // pred_check_branch
    %81 = sbr.rel (0) target = $region17
  $region16: #{_lambda_.47} parent=0 // pred_region
    _
  $region17: #{_lambda_.47} parent=0 // pred_fallthru
    _
  // Predicated region
  $region18: #{_lambda_.47} parent=0 // pred_check
    _
  $region19: #{_lambda_.47} parent=0 // pred_check_branch
    %83 = sbr.rel (0) target = $region21
  $region20: #{_lambda_.47} parent=0 // pred_region
    _
  $region21: #{_lambda_.47} parent=0 // pred_fallthru
    _

// kernel: _lambda_.51
$region0: #{_lambda_.51}
  #allocation0 [shape = 'u32[]', space=smem, size = 0x4, offset = 0x4, fixed_abs, tag = 'smem constant byte address 0x4 - core index']
  #allocation1 [shape = 'u32[72,128]{1,0:T(1,128)}', space=vmem, size = 0x9000, scoped, tag = 'internal scratch']
  %s0 = inlined_call_operand.vmem [shape: bf16[32,32], index: 0, kind: input, shape index: {}]
  %s1 = inlined_call_operand.vmem [shape: bf16[32,32], index: 1, kind: input, shape index: {}]
  %s2 = inlined_call_operand.vmem [shape: f32[1,32], index: 2, kind: input, shape index: {}]
  %s3 = inlined_call_operand.vmem [shape: f32[32,32], index: 3, kind: output, shape index: {}]
  %s4 = sld [smem:[#allocation0]]
  $region22: #{_lambda_.51} parent=0
    _
  %s6 = ssub.s32 1, %s4
  %s7 = scalar_select 0, %s6, %s4
  // Predicated region
  $region2: #{_lambda_.51} parent=0 // pred_check
    _
  $region3: #{_lambda_.51} parent=0 // pred_check_branch
    %9 = sbr.rel (0) target = $region5
  $region4: #{_lambda_.51} parent=0 // pred_region
    _
  $region5: #{_lambda_.51} parent=0 // pred_fallthru
    _
  // Predicated region
  $region6: #{_lambda_.51} parent=0 // pred_check
    _
  $region7: #{_lambda_.51} parent=0 // pred_check_branch
    %11 = sbr.rel (0) target = $region9
  $region8: #{_lambda_.51} parent=0 // pred_region
    _
  $region9: #{_lambda_.51} parent=0 // pred_fallthru
    _
  // Predicated region
  $region10: #{_lambda_.51} parent=0 // pred_check
    _
  $region11: #{_lambda_.51} parent=0 // pred_check_branch
    %13 = sbr.rel (0) target = $region13
  $region12: #{_lambda_.51} parent=0 // pred_region
    _
  $region13: #{_lambda_.51} parent=0 // pred_fallthru
    _
  %v15 = vld [vmem:[%s0] sm:$0xf]
  %v16 = vld [vmem:[%s0 + $0x4] sm:$0xf]
  %v17 = vld [vmem:[%s0 + $0x8] sm:$0xf]
  %v18 = vld [vmem:[%s0 + $0xc] sm:$0xf]
  %v19 = vld [vmem:[%s1] sm:$0xf]
  %v20 = vld [vmem:[%s1 + $0x4] sm:$0xf]
  %v21 = vld [vmem:[%s1 + $0x8] sm:$0xf]
  %v22 = vld [vmem:[%s1 + $0xc] sm:$0xf]
  %v23 = vld [vmem:[%s2] sm:$0x1]
  %v25 = vperm.slane %v23, 0
  %v31 = vunpack.c.l.b16 %v15
  %v32 = vunpack.c.l.b16 %v16
  %v33 = vunpack.c.l.b16 %v17
  %v34 = vunpack.c.l.b16 %v18
  %v35 = vpack.c.b16 %v32, %v31
  %v36 = vpack.c.b16 %v34, %v33
  %v41 = vunpack.c.l.b16 %v19
  %v42 = vunpack.c.l.b16 %v20
  %v43 = vunpack.c.l.b16 %v21
  %v44 = vunpack.c.l.b16 %v22
  %v45 = vpack.c.b16 %v42, %v41
  %v46 = vpack.c.b16 %v44, %v43
  %vm49 = vcmask 261120
  %v51 = vsel %vm49, %v35, 0
  %v54 = vsel %vm49, %v36, 0
  %56 = vmatpush.bf16.msra.mxu0 0
  %57 = vmatpush.bf16.msra.mxu0 0
  %58 = vmatpush.bf16.msra.mxu0 0
  %59 = vmatpush.bf16.msra.mxu0 0
  %60 = vmatpush.bf16.msra.mxu0 0
  %61 = vmatpush.bf16.msra.mxu0 0
  %62 = vmatpush.bf16.msra.mxu0 %v46
  %63 = vmatpush.bf16.msra.mxu0 %v45
  %64 = vmatmul.bf16.gmra.mxu0 %v51
  %v65 = vpop.f32.mrf.mxu0
  %v66 = vadd.f32 %v25, %v65
  %v67 = vpop.f32.mrf.mxu0
  %v68 = vadd.f32 %v25, %v67
  %69 = vmatmul.bf16.gmra.mxu0 %v54
  %v70 = vpop.f32.mrf.mxu0
  %v71 = vadd.f32 %v25, %v70
  %v72 = vpop.f32.mrf.mxu0
  %v73 = vadd.f32 %v25, %v72
  %74 = vdwg.mxu0
  %75 = vst.msk [vmem:[%s3] sm:$0xff] %vm49, %v66
  %76 = vst.msk [vmem:[%s3 + $0x8] sm:$0xff] %vm49, %v68
  %77 = vst.msk [vmem:[%s3 + $0x10] sm:$0xff] %vm49, %v71
  %78 = vst.msk [vmem:[%s3 + $0x18] sm:$0xff] %vm49, %v73
  // Predicated region
  $region14: #{_lambda_.51} parent=0 // pred_check
    _
  $region15: #{_lambda_.51} parent=0 // pred_check_branch
    %80 = sbr.rel (0) target = $region17
  $region16: #{_lambda_.51} parent=0 // pred_region
    _
  $region17: #{_lambda_.51} parent=0 // pred_fallthru
    _
  // Predicated region
  $region18: #{_lambda_.51} parent=0 // pred_check
    _
  $region19: #{_lambda_.51} parent=0 // pred_check_branch
    %82 = sbr.rel (0) target = $region21
  $region20: #{_lambda_.51} parent=0 // pred_region
    _
  $region21: #{_lambda_.51} parent=0 // pred_fallthru
    _

// kernel: _lambda_.52
$region0: #{_lambda_.52}
  #allocation0 [shape = 'u32[]', space=smem, size = 0x4, offset = 0x4, fixed_abs, tag = 'smem constant byte address 0x4 - core index']
  #allocation1 [shape = 'u32[72,128]{1,0:T(1,128)}', space=vmem, size = 0x9000, scoped, tag = 'internal scratch']
  %s0 = inlined_call_operand.vmem [shape: bf16[32,32], index: 0, kind: input, shape index: {}]
  %s1 = inlined_call_operand.vmem [shape: bf16[32,16], index: 1, kind: input, shape index: {}]
  %s2 = inlined_call_operand.vmem [shape: f32[1,16], index: 2, kind: input, shape index: {}]
  %s3 = inlined_call_operand.vmem [shape: f32[32,16], index: 3, kind: output, shape index: {}]
  %s4 = sld [smem:[#allocation0]]
  $region22: #{_lambda_.52} parent=0
    _
  %s6 = ssub.s32 1, %s4
  %s7 = scalar_select 0, %s6, %s4
  // Predicated region
  $region2: #{_lambda_.52} parent=0 // pred_check
    _
  $region3: #{_lambda_.52} parent=0 // pred_check_branch
    %9 = sbr.rel (0) target = $region5
  $region4: #{_lambda_.52} parent=0 // pred_region
    _
  $region5: #{_lambda_.52} parent=0 // pred_fallthru
    _
  // Predicated region
  $region6: #{_lambda_.52} parent=0 // pred_check
    _
  $region7: #{_lambda_.52} parent=0 // pred_check_branch
    %11 = sbr.rel (0) target = $region9
  $region8: #{_lambda_.52} parent=0 // pred_region
    _
  $region9: #{_lambda_.52} parent=0 // pred_fallthru
    _
  // Predicated region
  $region10: #{_lambda_.52} parent=0 // pred_check
    _
  $region11: #{_lambda_.52} parent=0 // pred_check_branch
    %13 = sbr.rel (0) target = $region13
  $region12: #{_lambda_.52} parent=0 // pred_region
    _
  $region13: #{_lambda_.52} parent=0 // pred_fallthru
    _
  %v15 = vld [vmem:[%s0] sm:$0xf]
  %v16 = vld [vmem:[%s0 + $0x4] sm:$0xf]
  %v17 = vld [vmem:[%s0 + $0x8] sm:$0xf]
  %v18 = vld [vmem:[%s0 + $0xc] sm:$0xf]
  %v19 = vld [vmem:[%s1] sm:$0xf]
  %v20 = vld [vmem:[%s1 + $0x4] sm:$0xf]
  %v21 = vld [vmem:[%s1 + $0x8] sm:$0xf]
  %v22 = vld [vmem:[%s1 + $0xc] sm:$0xf]
  %v23 = vld [vmem:[%s2] sm:$0x1]
  %v25 = vperm.slane %v23, 0
  %v31 = vunpack.c.l.b16 %v15
  %v32 = vunpack.c.l.b16 %v16
  %v33 = vunpack.c.l.b16 %v17
  %v34 = vunpack.c.l.b16 %v18
  %v35 = vpack.c.b16 %v32, %v31
  %v36 = vpack.c.b16 %v34, %v33
  %v41 = vunpack.c.l.b16 %v19
  %v42 = vunpack.c.l.b16 %v20
  %v43 = vunpack.c.l.b16 %v21
  %v44 = vunpack.c.l.b16 %v22
  %v45 = vpack.c.b16 %v42, %v41
  %v46 = vpack.c.b16 %v44, %v43
  %vm49 = vcmask 261120
  %v51 = vsel %vm49, %v35, 0
  %v54 = vsel %vm49, %v36, 0
  %56 = vmatpush.bf16.msra.mxu0 0
  %57 = vmatpush.bf16.msra.mxu0 0
  %58 = vmatpush.bf16.msra.mxu0 0
  %59 = vmatpush.bf16.msra.mxu0 0
  %60 = vmatpush.bf16.msra.mxu0 0
  %61 = vmatpush.bf16.msra.mxu0 0
  %62 = vmatpush.bf16.msra.mxu0 %v46
  %63 = vmatpush.bf16.msra.mxu0 %v45
  %64 = vmatmul.bf16.gmra.mxu0 %v51
  %v65 = vpop.f32.mrf.mxu0
  %v66 = vadd.f32 %v25, %v65
  %v67 = vpop.f32.mrf.mxu0
  %v68 = vadd.f32 %v25, %v67
  %69 = vmatmul.bf16.gmra.mxu0 %v54
  %v70 = vpop.f32.mrf.mxu0
  %v71 = vadd.f32 %v25, %v70
  %v72 = vpop.f32.mrf.mxu0
  %v73 = vadd.f32 %v25, %v72
  %74 = vdwg.mxu0
  %vm75 = vcmask 130048
  %76 = vst.msk [vmem:[%s3] sm:$0xff] %vm75, %v66
  %77 = vst.msk [vmem:[%s3 + $0x8] sm:$0xff] %vm75, %v68
  %78 = vst.msk [vmem:[%s3 + $0x10] sm:$0xff] %vm75, %v71
  %79 = vst.msk [vmem:[%s3 + $0x18] sm:$0xff] %vm75, %v73
  // Predicated region
  $region14: #{_lambda_.52} parent=0 // pred_check
    _
  $region15: #{_lambda_.52} parent=0 // pred_check_branch
    %81 = sbr.rel (0) target = $region17
  $region16: #{_lambda_.52} parent=0 // pred_region
    _
  $region17: #{_lambda_.52} parent=0 // pred_fallthru
    _
  // Predicated region
  $region18: #{_lambda_.52} parent=0 // pred_check
    _
  $region19: #{_lambda_.52} parent=0 // pred_check_branch
    %83 = sbr.rel (0) target = $region21
  $region20: #{_lambda_.52} parent=0 // pred_region
    _
  $region21: #{_lambda_.52} parent=0 // pred_fallthru
    _

// kernel: _lambda_.53
$region0: #{_lambda_.53}
  #allocation0 [shape = 'u32[]', space=smem, size = 0x4, offset = 0x4, fixed_abs, tag = 'smem constant byte address 0x4 - core index']
  #allocation1 [shape = 'u32[72,128]{1,0:T(1,128)}', space=vmem, size = 0x9000, scoped, tag = 'internal scratch']
  %s0 = inlined_call_operand.vmem [shape: f32[32,16], index: 0, kind: input, shape index: {}]
  %s1 = inlined_call_operand.vmem [shape: f32[32,8], index: 1, kind: input, shape index: {}]
  %s2 = inlined_call_operand.vmem [shape: f32[32,1], index: 2, kind: input, shape index: {}]
  %s3 = inlined_call_operand.vmem [shape: f32[32,8], index: 3, kind: output, shape index: {0}]
  %s4 = inlined_call_operand.vmem [shape: f32[32,8], index: 4, kind: output, shape index: {1}]
  %5 = xla_tuple %s3, %s4
  %s6 = sld [smem:[#allocation0]]
  $region30: #{_lambda_.53} parent=0
    _
  %s8 = ssub.s32 1, %s6
  %s9 = scalar_select 0, %s8, %s6
  // Predicated region
  $region2: #{_lambda_.53} parent=0 // pred_check
    _
  $region3: #{_lambda_.53} parent=0 // pred_check_branch
    %11 = sbr.rel (0) target = $region5
  $region4: #{_lambda_.53} parent=0 // pred_region
    _
  $region5: #{_lambda_.53} parent=0 // pred_fallthru
    _
  // Predicated region
  $region6: #{_lambda_.53} parent=0 // pred_check
    _
  $region7: #{_lambda_.53} parent=0 // pred_check_branch
    %13 = sbr.rel (0) target = $region9
  $region8: #{_lambda_.53} parent=0 // pred_region
    _
  $region9: #{_lambda_.53} parent=0 // pred_fallthru
    _
  // Predicated region
  $region10: #{_lambda_.53} parent=0 // pred_check
    _
  $region11: #{_lambda_.53} parent=0 // pred_check_branch
    %15 = sbr.rel (0) target = $region13
  $region12: #{_lambda_.53} parent=0 // pred_region
    _
  $region13: #{_lambda_.53} parent=0 // pred_fallthru
    _
  %v16 = vld [vmem:[%s2] sm:$0xff]
  %v17 = vld [vmem:[%s2 + $0x8] sm:$0xff]
  %v18 = vld [vmem:[%s2 + $0x10] sm:$0xff]
  %v19 = vld [vmem:[%s2 + $0x18] sm:$0xff]
  %v20 = vld [vmem:[%s0] sm:$0xff]
  %v21 = vld [vmem:[%s0 + $0x8] sm:$0xff]
  %v22 = vld [vmem:[%s0 + $0x10] sm:$0xff]
  %v23 = vld [vmem:[%s0 + $0x18] sm:$0xff]
  %25 = vset.pattern.permute.xlu0 0
  %26 = vperm.xlu0 %25, %v16
  %v27 = vpop.permute.xlu0 %26
  %30 = vset.pattern.permute.xlu0 0
  %31 = vperm.xlu0 %30, %v17
  %v32 = vpop.permute.xlu0 %31
  %35 = vset.pattern.permute.xlu0 0
  %36 = vperm.xlu0 %35, %v18
  %v37 = vpop.permute.xlu0 %36
  %40 = vset.pattern.permute.xlu0 0
  %41 = vperm.xlu0 %40, %v19
  %v42 = vpop.permute.xlu0 %41
  %v44 = vmul.f32 %v20, %v27
  %v45 = vmul.f32 %v21, %v32
  %v46 = vmul.f32 %v22, %v37
  %v47 = vmul.f32 %v23, %v42
  %52 = vrot.lane.b32.xlu0 %v44, 120
  %v53 = vpop.permute.xlu0 %52
  %54 = vrot.lane.b32.xlu0 %v45, 120
  %v55 = vpop.permute.xlu0 %54
  %56 = vrot.lane.b32.xlu0 %v46, 120
  %v57 = vpop.permute.xlu0 %56
  %58 = vrot.lane.b32.xlu0 %v47, 120
  %v59 = vpop.permute.xlu0 %58
  %vm64 = vcmask 64512
  %65 = vst.msk [vmem:[%s4] sm:$0xff] %vm64, %v53
  %66 = vst.msk [vmem:[%s4 + $0x8] sm:$0xff] %vm64, %v55
  %67 = vst.msk [vmem:[%s4 + $0x10] sm:$0xff] %vm64, %v57
  %68 = vst.msk [vmem:[%s4 + $0x18] sm:$0xff] %vm64, %v59
  %v69 = vld [vmem:[%s1] sm:$0xff]
  %v70 = vld [vmem:[%s1 + $0x8] sm:$0xff]
  %v71 = vld [vmem:[%s1 + $0x10] sm:$0xff]
  %v72 = vld [vmem:[%s1 + $0x18] sm:$0xff]
  %v73 = vmul.f32 %v44, 1.442695
  %v74 = vpow.pop %v73
  %v75 = vmul.f32 %v45, 1.442695
  %v76 = vpow.pop %v75
  %v77 = vmul.f32 %v46, 1.442695
  %v78 = vpow.pop %v77
  %v79 = vmul.f32 %v47, 1.442695
  %v80 = vpow.pop %v79
  %85 = vrot.lane.b32.xlu0 %v74, 120
  %v86 = vpop.permute.xlu0 %85
  %87 = vrot.lane.b32.xlu0 %v76, 120
  %v88 = vpop.permute.xlu0 %87
  %89 = vrot.lane.b32.xlu0 %v78, 120
  %v90 = vpop.permute.xlu0 %89
  %91 = vrot.lane.b32.xlu0 %v80, 120
  %v92 = vpop.permute.xlu0 %91
  %v97 = vmul.f32 %v69, %v86
  %v98 = vmul.f32 %v70, %v88
  %v99 = vmul.f32 %v71, %v90
  %v100 = vmul.f32 %v72, %v92
  %v101 = vmul.f32 %v97, %v27
  %v102 = vmul.f32 %v98, %v32
  %v103 = vmul.f32 %v99, %v37
  %v104 = vmul.f32 %v100, %v42
  %v105 = vadd.f32 %v44, %v101
  %v106 = vadd.f32 %v45, %v102
  %v107 = vadd.f32 %v46, %v103
  %v108 = vadd.f32 %v47, %v104
  %109 = vst.msk [vmem:[%s3] sm:$0xff] %vm64, %v105
  %110 = vst.msk [vmem:[%s3 + $0x8] sm:$0xff] %vm64, %v106
  %111 = vst.msk [vmem:[%s3 + $0x10] sm:$0xff] %vm64, %v107
  %112 = vst.msk [vmem:[%s3 + $0x18] sm:$0xff] %vm64, %v108
  // Predicated region
  $region14: #{_lambda_.53} parent=0 // pred_check
    _
  $region15: #{_lambda_.53} parent=0 // pred_check_branch
    %114 = sbr.rel (0) target = $region17
  $region16: #{_lambda_.53} parent=0 // pred_region
    _
  $region17: #{_lambda_.53} parent=0 // pred_fallthru
    _
  // Predicated region
  $region18: #{_lambda_.53} parent=0 // pred_check
    _
  $region19: #{_lambda_.53} parent=0 // pred_check_branch
    %116 = sbr.rel (0) target = $region21
  $region20: #{_lambda_.53} parent=0 // pred_region
    _
  $region21: #{_lambda_.53} parent=0 // pred_fallthru
    _
  // Predicated region
  $region22: #{_lambda_.53} parent=0 // pred_check
    _
  $region23: #{_lambda_.53} parent=0 // pred_check_branch
    %118 = sbr.rel (0) target = $region25
  $region24: #{_lambda_.53} parent=0 // pred_region
    _
  $region25: #{_lambda_.53} parent=0 // pred_fallthru
    _
  // Predicated region
  $region26: #{_lambda_.53} parent=0 // pred_check
    _
  $region27: #{_lambda_.53} parent=0 // pred_check_branch
    %120 = sbr.rel (0) target = $region29
  $region28: #{_lambda_.53} parent=0 // pred_region
    _
  $region29: #{_lambda_.53} parent=0 // pred_fallthru
    _

</llo_original>
